<compile_context>
chip_gen: v7x
topology: tpu7x:2x2x1
jax: 0.10.0
libtpu: 0.0.40
codegen_flags: <defaults>
</compile_context>

<pallas_src>
import functools

import jax
import jax.numpy as jnp
from jax.experimental import pallas as pl
from jax.experimental.pallas import tpu as pltpu  # noqa: F401

_LANE = 128
_SUBLANE = 8


def _pad_to(n, m):
    return ((n + m - 1) // m) * m


# --------------------------------------------------------------------------
# Fused kernel: LSTM over both scenes + MLP head, single invocation.
# --------------------------------------------------------------------------
def _scene_lstm_fused_kernel(x1_ref, x2_ref, w_ref, out_ref, *,
                             T, B, H, L0, layout, relu_flags, final_cols):
    four_h = 4 * H

    def piece(name, cols=None):
        r0, nr, nc = layout[name]
        nc = nc if cols is None else cols
        # Static, sublane-aligned row window; lane trim on the loaded value.
        return w_ref[pl.ds(r0, nr), :][:, :nc]

    wih = piece("w_ih")          # (F, 4H)
    whh = piece("w_hh")          # (H, 4H)
    b_l = piece("b_lstm")        # (1, 4H)

    # Pre-scale the g-gate columns by 2: tanh(z) == 2*sigmoid(2z) - 1, so one
    # full-width sigmoid covers all four gates.
    lane = jax.lax.broadcasted_iota(jnp.int32, (1, four_h), 1)
    g_scale = jnp.where((lane >= 2 * H) & (lane < 3 * H),
                        jnp.float32(2.0), jnp.float32(1.0))

    # Hoisted input projection: all timesteps, both scenes, one matmul.
    # Rows [0:T*B] = scene 1 (time-major), rows [T*B:2*T*B] = scene 2.
    xs = jnp.concatenate([x1_ref[...], x2_ref[...]], axis=0)        # (2TB, F)
    gx = (jnp.dot(xs, wih, preferred_element_type=jnp.float32) + b_l) * g_scale
    whh_s = whh * g_scale                                            # (H, 4H)

    TB = T * B
    two_b = 2 * B
    h = jnp.zeros((two_b, H), jnp.float32)
    c = jnp.zeros((two_b, H), jnp.float32)

    # Recurrence, fully unrolled.  The gx slices/concat below do not depend on
    # h/c, so only the h @ W_hh matmul + the gate elementwise ops sit on the
    # serial critical path.
    for t in range(T):
        g_t = jnp.concatenate(
            [gx[t * B:(t + 1) * B, :],
             gx[TB + t * B:TB + (t + 1) * B, :]], axis=0)            # (2B, 4H)
        gates = g_t + jnp.dot(h, whh_s, preferred_element_type=jnp.float32)
        a = jax.nn.sigmoid(gates)          # one lane-dense EUP pass
        i_g = a[:, 0 * H:1 * H]
        f_g = a[:, 1 * H:2 * H]
        g_g = 2.0 * a[:, 2 * H:3 * H] - 1.0    # == tanh of the raw g gate
        o_g = a[:, 3 * H:4 * H]
        c = f_g * c + i_g * g_g
        h = o_g * jnp.tanh(c)

    # ---- MLP head ----
    # Layer 0 absorbs the feature-dim concat: one lane-dense (2B, 2*L0) dot.
    z = jnp.dot(h, piece("w0cat"), preferred_element_type=jnp.float32)
    y = z[:B, :L0] + z[B:, L0:2 * L0] + piece("b0")
    if relu_flags[0]:
        y = jnp.maximum(y, 0.0)

    n_layers = len(relu_flags)
    for li in range(1, n_layers):
        last = li == n_layers - 1
        cols = final_cols if last else None    # last layer: 128-lane (zero-padded)
        w = piece("w%d" % li, cols=cols)
        b = piece("b%d" % li, cols=cols)
        y = jnp.dot(y, w, preferred_element_type=jnp.float32) + b
        if relu_flags[li]:
            y = jnp.maximum(y, 0.0)

    # Dense output block: pad (exact zeros) up to out_ref's (8, 128) shape.
    pad_c = out_ref.shape[1] - y.shape[1]
    if pad_c:
        y = jnp.concatenate(
            [y, jnp.zeros((y.shape[0], pad_c), jnp.float32)], axis=1)
    pad_r = out_ref.shape[0] - y.shape[0]
    if pad_r:
        y = jnp.concatenate(
            [y, jnp.zeros((pad_r, y.shape[1]), jnp.float32)], axis=0)
    out_ref[...] = y.astype(out_ref.dtype)


# --------------------------------------------------------------------------
# One-time packing of every constant operand into a single zero-padded slab.
# --------------------------------------------------------------------------
def pack_params(params):
    w_ih_t = params["w_ih_t"]                  # (F, 4H)
    w_hh_t = params["w_hh_t"]                  # (H, 4H)
    b_lstm = params["b_lstm"].reshape(1, -1)   # (1, 4H)
    mlp = params["mlp"]
    H = w_hh_t.shape[0]

    # Layer-0 concat fusion: (2H, L0) -> (H, 2*L0) column-stacked weight.
    w0_t, b0, _ = mlp[0]
    L0 = w0_t.shape[1]
    w0cat = jnp.concatenate([w0_t[:H, :], w0_t[H:, :]], axis=1)

    entries = [("w_ih", w_ih_t), ("w_hh", w_hh_t), ("b_lstm", b_lstm),
               ("w0cat", w0cat), ("b0", b0.reshape(1, -1))]
    for li in range(1, len(mlp)):
        w_t, b, _ = mlp[li]
        entries.append(("w%d" % li, w_t))
        entries.append(("b%d" % li, b.reshape(1, -1)))

    slab_w = max(_pad_to(a.shape[1], _LANE) for _, a in entries)
    pieces, layout, row = [], {}, 0
    for name, a in entries:
        r, c = a.shape
        rp = _pad_to(r, _SUBLANE)
        blk = jnp.zeros((rp, slab_w), jnp.float32)
        blk = blk.at[:r, :c].set(a.astype(jnp.float32))
        pieces.append(blk)
        layout[name] = (row, r, c)
        row += rp
    slab = jnp.concatenate(pieces, axis=0)     # single (rows, 128) f32 slab

    meta = dict(layout=layout,
                relu_flags=tuple(bool(r) for (_, _, r) in mlp),
                H=H, L0=L0, slab_w=slab_w,
                f_out=mlp[-1][0].shape[1])
    return slab, meta


# --------------------------------------------------------------------------
# SceneLSTM forward: one fused pallas_call, 3 input DMAs total.
# --------------------------------------------------------------------------
def scene_lstm_forward(slab, meta, x1, x2):
    T, B, F = x1.shape
    out_rows = _pad_to(B, _SUBLANE)
    out_cols = _pad_to(meta["f_out"], _LANE)
    kernel = functools.partial(
        _scene_lstm_fused_kernel,
        T=T, B=B, H=meta["H"], L0=meta["L0"],
        layout=meta["layout"], relu_flags=meta["relu_flags"],
        final_cols=min(out_cols, meta["slab_w"]))
    out = pl.pallas_call(
        kernel,
        out_shape=jax.ShapeDtypeStruct((out_rows, out_cols), jnp.float32),
    )(x1.reshape(T * B, F).astype(jnp.float32),
      x2.reshape(T * B, F).astype(jnp.float32),
      slab)
    return out[:B, :meta["f_out"]]


# --------------------------------------------------------------------------
# Deterministic parameter construction (mirrors SceneLSTM.__init__ shapes).
# --------------------------------------------------------------------------
def init_params(key, f_obj, h, layers):
    keys = jax.random.split(key, 8 + 2 * (len(layers) + 1))
    ki = iter(range(len(keys)))
    scale = 0.1

    # torch.nn.LSTM(f_obj, h): weight_ih (4h, f_obj), weight_hh (4h, h),
    # bias_ih (4h,), bias_hh (4h,).  Stored transposed, biases summed.
    w_ih = scale * jax.random.normal(keys[next(ki)], (4 * h, f_obj), jnp.float32)
    w_hh = scale * jax.random.normal(keys[next(ki)], (4 * h, h), jnp.float32)
    b_ih = scale * jax.random.normal(keys[next(ki)], (4 * h,), jnp.float32)
    b_hh = scale * jax.random.normal(keys[next(ki)], (4 * h,), jnp.float32)

    mlp = []
    f_in = 2 * h
    for f_out in layers:
        w = scale * jax.random.normal(keys[next(ki)], (f_out, f_in), jnp.float32)
        b = scale * jax.random.normal(keys[next(ki)], (f_out,), jnp.float32)
        mlp.append((w.T, b, True))      # Linear + ReLU
        f_in = f_out
    w = scale * jax.random.normal(keys[next(ki)], (2, f_in), jnp.float32)
    b = scale * jax.random.normal(keys[next(ki)], (2,), jnp.float32)
    mlp.append((w.T, b, False))         # final Linear(f_in, 2), no ReLU

    return {
        "w_ih_t": w_ih.T,               # (f_obj, 4h)
        "w_hh_t": w_hh.T,               # (h, 4h)
        "b_lstm": b_ih + b_hh,          # (4h,)
        "mlp": mlp,
    }


# --------------------------------------------------------------------------
# Pure-JAX reference (PyTorch gate order i|f|g|o).
# --------------------------------------------------------------------------
def _reference(params, x1, x2):
    H = params["w_hh_t"].shape[0]

    def run_lstm(x):
        def step(carry, x_t):
            h, c = carry
            gates = x_t @ params["w_ih_t"] + h @ params["w_hh_t"] + params["b_lstm"]
            i = jax.nn.sigmoid(gates[:, 0 * H:1 * H])
            f = jax.nn.sigmoid(gates[:, 1 * H:2 * H])
            g = jnp.tanh(gates[:, 2 * H:3 * H])
            o = jax.nn.sigmoid(gates[:, 3 * H:4 * H])
            c = f * c + i * g
            h = o * jnp.tanh(c)
            return (h, c), None

        B = x.shape[1]
        h0 = jnp.zeros((B, H), jnp.float32)
        (h, _), _ = jax.lax.scan(step, (h0, h0), x)
        return h

    h = jnp.concatenate([run_lstm(x1), run_lstm(x2)], axis=1)
    for (w_t, b, relu) in params["mlp"]:
        h = h @ w_t + b
        if relu:
            h = jnp.maximum(h, 0.0)
    return h


if __name__ == "__main__":
    # Small shapes consistent with the module: f_obj=8, hidden=32,
    # layers=[64, 32], seq=8, batch=4.  LSTM inputs are time-major (T, B, F).
    F_OBJ, HID, LAYERS = 8, 32, [64, 32]
    T, B = 8, 4

    key = jax.random.PRNGKey(0)
    k_p, k_x1, k_x2 = jax.random.split(key, 3)
    params = init_params(k_p, F_OBJ, HID, LAYERS)
    slab, meta = pack_params(params)
    x1 = jax.random.normal(k_x1, (T, B, F_OBJ), jnp.float32)
    x2 = jax.random.normal(k_x2, (T, B, F_OBJ), jnp.float32)

    out = scene_lstm_forward(slab, meta, x1, x2)
    out = jax.block_until_ready(out)

    ref = _reference(params, x1, x2)
    assert out.shape == (B, 2)
    assert jnp.allclose(out, ref, atol=1e-4, rtol=1e-4), \
        float(jnp.max(jnp.abs(out - ref)))

    print("KERNEL_OK")
</pallas_src>

<mosaic_0001>
module attributes {stable_mosaic.version = 11 : i64} {
  func.func @_scene_lstm_fused_kernel(%arg0: memref<32x8xf32, #tpu.memory_space<vmem>>, %arg1: memref<32x8xf32, #tpu.memory_space<vmem>>, %arg2: memref<200x128xf32, #tpu.memory_space<vmem>>, %arg3: memref<8x128xf32, #tpu.memory_space<vmem>>) attributes {dimension_semantics = [], scalar_prefetch = 0 : i64, scratch_operands = 0 : i64, tpu.core_type = #tpu.core_type<tc>} {
    %c0 = arith.constant 0 : index
    %c0_0 = arith.constant 0 : index
    %0 = vector.load %arg2[%c0, %c0_0] : memref<200x128xf32, #tpu.memory_space<vmem>>, vector<8x128xf32>
    %c8 = arith.constant 8 : index
    %c0_1 = arith.constant 0 : index
    %1 = vector.load %arg2[%c8, %c0_1] : memref<200x128xf32, #tpu.memory_space<vmem>>, vector<32x128xf32>
    %c40 = arith.constant 40 : index
    %c0_2 = arith.constant 0 : index
    %2 = vector.load %arg2[%c40, %c0_2] : memref<200x128xf32, #tpu.memory_space<vmem>>, vector<1x128xf32>
    %3 = tpu.iota {dimensions = array<i32: 1>} : vector<1x128xi32>
    %c64_i32 = arith.constant 64 : i32
    %4 = vector.broadcast %c64_i32 : i32 to vector<1x128xi32>
    %5 = arith.cmpi sge, %3, %4 : vector<1x128xi32>
    %c96_i32 = arith.constant 96 : i32
    %6 = vector.broadcast %c96_i32 : i32 to vector<1x128xi32>
    %7 = arith.cmpi slt, %3, %6 : vector<1x128xi32>
    %8 = arith.andi %5, %7 : vector<1x128xi1>
    %cst = arith.constant 2.000000e+00 : f32
    %cst_3 = arith.constant 1.000000e+00 : f32
    %9 = vector.broadcast %cst : f32 to vector<1x128xf32>
    %10 = vector.broadcast %cst_3 : f32 to vector<1x128xf32>
    %11 = arith.select %8, %9, %10 : vector<1x128xi1>, vector<1x128xf32>
    %c0_4 = arith.constant 0 : index
    %c0_5 = arith.constant 0 : index
    %12 = vector.load %arg0[%c0_4, %c0_5] : memref<32x8xf32, #tpu.memory_space<vmem>>, vector<32x8xf32>
    %c0_6 = arith.constant 0 : index
    %c0_7 = arith.constant 0 : index
    %13 = vector.load %arg1[%c0_6, %c0_7] : memref<32x8xf32, #tpu.memory_space<vmem>>, vector<32x8xf32>
    %14 = tpu.concatenate %12, %13 in 0 : vector<32x8xf32>, vector<32x8xf32> -> vector<64x8xf32>
    %cst_8 = arith.constant dense<0.000000e+00> : vector<64x128xf32>
    %15 = tpu.matmul %14, %0, %cst_8 {dimension_numbers = #tpu.dot_dimension_numbers<[1], [0], [0], [1], [0, 0, 1, 1], [], []>} : vector<64x8xf32>, vector<8x128xf32>, vector<64x128xf32> -> vector<64x128xf32>
    %16 = vector.broadcast %2 : vector<1x128xf32> to vector<64x128xf32>
    %17 = arith.addf %15, %16 : vector<64x128xf32>
    %18 = vector.broadcast %11 : vector<1x128xf32> to vector<64x128xf32>
    %19 = arith.mulf %17, %18 : vector<64x128xf32>
    %20 = vector.broadcast %11 : vector<1x128xf32> to vector<32x128xf32>
    %21 = arith.mulf %1, %20 : vector<32x128xf32>
    %cst_9 = arith.constant 0.000000e+00 : f32
    %22 = vector.broadcast %cst_9 : f32 to vector<8x32xf32>
    %cst_10 = arith.constant 0.000000e+00 : f32
    %23 = vector.broadcast %cst_10 : f32 to vector<8x32xf32>
    %24 = vector.extract_strided_slice %19 {offsets = [0, 0], sizes = [4, 128], strides = [1, 1]} : vector<64x128xf32> to vector<4x128xf32>
    %25 = vector.extract_strided_slice %19 {offsets = [32, 0], sizes = [4, 128], strides = [1, 1]} : vector<64x128xf32> to vector<4x128xf32>
    %26 = tpu.concatenate %24, %25 in 0 : vector<4x128xf32>, vector<4x128xf32> -> vector<8x128xf32>
    %cst_11 = arith.constant dense<0.000000e+00> : vector<8x128xf32>
    %27 = tpu.matmul %22, %21, %cst_11 {dimension_numbers = #tpu.dot_dimension_numbers<[1], [0], [0], [1], [0, 0, 1, 1], [], []>} : vector<8x32xf32>, vector<32x128xf32>, vector<8x128xf32> -> vector<8x128xf32>
    %28 = arith.addf %26, %27 : vector<8x128xf32>
    %29 = arith.negf %28 : vector<8x128xf32>
    %30 = math.exp %29 : vector<8x128xf32>
    %cst_12 = arith.constant 1.000000e+00 : f32
    %31 = vector.broadcast %cst_12 : f32 to vector<8x128xf32>
    %32 = arith.addf %31, %30 : vector<8x128xf32>
    %33 = arith.divf %31, %32 : vector<8x128xf32>
    %34 = vector.extract_strided_slice %33 {offsets = [0, 0], sizes = [8, 32], strides = [1, 1]} : vector<8x128xf32> to vector<8x32xf32>
    %35 = vector.extract_strided_slice %33 {offsets = [0, 32], sizes = [8, 32], strides = [1, 1]} : vector<8x128xf32> to vector<8x32xf32>
    %36 = vector.extract_strided_slice %33 {offsets = [0, 64], sizes = [8, 32], strides = [1, 1]} : vector<8x128xf32> to vector<8x32xf32>
    %cst_13 = arith.constant 2.000000e+00 : f32
    %37 = vector.broadcast %cst_13 : f32 to vector<8x32xf32>
    %38 = arith.mulf %37, %36 : vector<8x32xf32>
    %cst_14 = arith.constant 1.000000e+00 : f32
    %39 = vector.broadcast %cst_14 : f32 to vector<8x32xf32>
    %40 = arith.subf %38, %39 : vector<8x32xf32>
    %41 = vector.extract_strided_slice %33 {offsets = [0, 96], sizes = [8, 32], strides = [1, 1]} : vector<8x128xf32> to vector<8x32xf32>
    %42 = arith.mulf %35, %23 : vector<8x32xf32>
    %43 = arith.mulf %34, %40 : vector<8x32xf32>
    %44 = arith.addf %42, %43 : vector<8x32xf32>
    %45 = math.tanh %44 : vector<8x32xf32>
    %46 = arith.mulf %41, %45 : vector<8x32xf32>
    %47 = vector.extract_strided_slice %19 {offsets = [4, 0], sizes = [4, 128], strides = [1, 1]} : vector<64x128xf32> to vector<4x128xf32>
    %48 = vector.extract_strided_slice %19 {offsets = [36, 0], sizes = [4, 128], strides = [1, 1]} : vector<64x128xf32> to vector<4x128xf32>
    %49 = tpu.concatenate %47, %48 in 0 : vector<4x128xf32>, vector<4x128xf32> -> vector<8x128xf32>
    %cst_15 = arith.constant dense<0.000000e+00> : vector<8x128xf32>
    %50 = tpu.matmul %46, %21, %cst_15 {dimension_numbers = #tpu.dot_dimension_numbers<[1], [0], [0], [1], [0, 0, 1, 1], [], []>} : vector<8x32xf32>, vector<32x128xf32>, vector<8x128xf32> -> vector<8x128xf32>
    %51 = arith.addf %49, %50 : vector<8x128xf32>
    %52 = arith.negf %51 : vector<8x128xf32>
    %53 = math.exp %52 : vector<8x128xf32>
    %cst_16 = arith.constant 1.000000e+00 : f32
    %54 = vector.broadcast %cst_16 : f32 to vector<8x128xf32>
    %55 = arith.addf %54, %53 : vector<8x128xf32>
    %56 = arith.divf %54, %55 : vector<8x128xf32>
    %57 = vector.extract_strided_slice %56 {offsets = [0, 0], sizes = [8, 32], strides = [1, 1]} : vector<8x128xf32> to vector<8x32xf32>
    %58 = vector.extract_strided_slice %56 {offsets = [0, 32], sizes = [8, 32], strides = [1, 1]} : vector<8x128xf32> to vector<8x32xf32>
    %59 = vector.extract_strided_slice %56 {offsets = [0, 64], sizes = [8, 32], strides = [1, 1]} : vector<8x128xf32> to vector<8x32xf32>
    %cst_17 = arith.constant 2.000000e+00 : f32
    %60 = vector.broadcast %cst_17 : f32 to vector<8x32xf32>
    %61 = arith.mulf %60, %59 : vector<8x32xf32>
    %cst_18 = arith.constant 1.000000e+00 : f32
    %62 = vector.broadcast %cst_18 : f32 to vector<8x32xf32>
    %63 = arith.subf %61, %62 : vector<8x32xf32>
    %64 = vector.extract_strided_slice %56 {offsets = [0, 96], sizes = [8, 32], strides = [1, 1]} : vector<8x128xf32> to vector<8x32xf32>
    %65 = arith.mulf %58, %44 : vector<8x32xf32>
    %66 = arith.mulf %57, %63 : vector<8x32xf32>
    %67 = arith.addf %65, %66 : vector<8x32xf32>
    %68 = math.tanh %67 : vector<8x32xf32>
    %69 = arith.mulf %64, %68 : vector<8x32xf32>
    %70 = vector.extract_strided_slice %19 {offsets = [8, 0], sizes = [4, 128], strides = [1, 1]} : vector<64x128xf32> to vector<4x128xf32>
    %71 = vector.extract_strided_slice %19 {offsets = [40, 0], sizes = [4, 128], strides = [1, 1]} : vector<64x128xf32> to vector<4x128xf32>
    %72 = tpu.concatenate %70, %71 in 0 : vector<4x128xf32>, vector<4x128xf32> -> vector<8x128xf32>
    %cst_19 = arith.constant dense<0.000000e+00> : vector<8x128xf32>
    %73 = tpu.matmul %69, %21, %cst_19 {dimension_numbers = #tpu.dot_dimension_numbers<[1], [0], [0], [1], [0, 0, 1, 1], [], []>} : vector<8x32xf32>, vector<32x128xf32>, vector<8x128xf32> -> vector<8x128xf32>
    %74 = arith.addf %72, %73 : vector<8x128xf32>
    %75 = arith.negf %74 : vector<8x128xf32>
    %76 = math.exp %75 : vector<8x128xf32>
    %cst_20 = arith.constant 1.000000e+00 : f32
    %77 = vector.broadcast %cst_20 : f32 to vector<8x128xf32>
    %78 = arith.addf %77, %76 : vector<8x128xf32>
    %79 = arith.divf %77, %78 : vector<8x128xf32>
    %80 = vector.extract_strided_slice %79 {offsets = [0, 0], sizes = [8, 32], strides = [1, 1]} : vector<8x128xf32> to vector<8x32xf32>
    %81 = vector.extract_strided_slice %79 {offsets = [0, 32], sizes = [8, 32], strides = [1, 1]} : vector<8x128xf32> to vector<8x32xf32>
    %82 = vector.extract_strided_slice %79 {offsets = [0, 64], sizes = [8, 32], strides = [1, 1]} : vector<8x128xf32> to vector<8x32xf32>
    %cst_21 = arith.constant 2.000000e+00 : f32
    %83 = vector.broadcast %cst_21 : f32 to vector<8x32xf32>
    %84 = arith.mulf %83, %82 : vector<8x32xf32>
    %cst_22 = arith.constant 1.000000e+00 : f32
    %85 = vector.broadcast %cst_22 : f32 to vector<8x32xf32>
    %86 = arith.subf %84, %85 : vector<8x32xf32>
    %87 = vector.extract_strided_slice %79 {offsets = [0, 96], sizes = [8, 32], strides = [1, 1]} : vector<8x128xf32> to vector<8x32xf32>
    %88 = arith.mulf %81, %67 : vector<8x32xf32>
    %89 = arith.mulf %80, %86 : vector<8x32xf32>
    %90 = arith.addf %88, %89 : vector<8x32xf32>
    %91 = math.tanh %90 : vector<8x32xf32>
    %92 = arith.mulf %87, %91 : vector<8x32xf32>
    %93 = vector.extract_strided_slice %19 {offsets = [12, 0], sizes = [4, 128], strides = [1, 1]} : vector<64x128xf32> to vector<4x128xf32>
    %94 = vector.extract_strided_slice %19 {offsets = [44, 0], sizes = [4, 128], strides = [1, 1]} : vector<64x128xf32> to vector<4x128xf32>
    %95 = tpu.concatenate %93, %94 in 0 : vector<4x128xf32>, vector<4x128xf32> -> vector<8x128xf32>
    %cst_23 = arith.constant dense<0.000000e+00> : vector<8x128xf32>
    %96 = tpu.matmul %92, %21, %cst_23 {dimension_numbers = #tpu.dot_dimension_numbers<[1], [0], [0], [1], [0, 0, 1, 1], [], []>} : vector<8x32xf32>, vector<32x128xf32>, vector<8x128xf32> -> vector<8x128xf32>
    %97 = arith.addf %95, %96 : vector<8x128xf32>
    %98 = arith.negf %97 : vector<8x128xf32>
    %99 = math.exp %98 : vector<8x128xf32>
    %cst_24 = arith.constant 1.000000e+00 : f32
    %100 = vector.broadcast %cst_24 : f32 to vector<8x128xf32>
    %101 = arith.addf %100, %99 : vector<8x128xf32>
    %102 = arith.divf %100, %101 : vector<8x128xf32>
    %103 = vector.extract_strided_slice %102 {offsets = [0, 0], sizes = [8, 32], strides = [1, 1]} : vector<8x128xf32> to vector<8x32xf32>
    %104 = vector.extract_strided_slice %102 {offsets = [0, 32], sizes = [8, 32], strides = [1, 1]} : vector<8x128xf32> to vector<8x32xf32>
    %105 = vector.extract_strided_slice %102 {offsets = [0, 64], sizes = [8, 32], strides = [1, 1]} : vector<8x128xf32> to vector<8x32xf32>
    %cst_25 = arith.constant 2.000000e+00 : f32
    %106 = vector.broadcast %cst_25 : f32 to vector<8x32xf32>
    %107 = arith.mulf %106, %105 : vector<8x32xf32>
    %cst_26 = arith.constant 1.000000e+00 : f32
    %108 = vector.broadcast %cst_26 : f32 to vector<8x32xf32>
    %109 = arith.subf %107, %108 : vector<8x32xf32>
    %110 = vector.extract_strided_slice %102 {offsets = [0, 96], sizes = [8, 32], strides = [1, 1]} : vector<8x128xf32> to vector<8x32xf32>
    %111 = arith.mulf %104, %90 : vector<8x32xf32>
    %112 = arith.mulf %103, %109 : vector<8x32xf32>
    %113 = arith.addf %111, %112 : vector<8x32xf32>
    %114 = math.tanh %113 : vector<8x32xf32>
    %115 = arith.mulf %110, %114 : vector<8x32xf32>
    %116 = vector.extract_strided_slice %19 {offsets = [16, 0], sizes = [4, 128], strides = [1, 1]} : vector<64x128xf32> to vector<4x128xf32>
    %117 = vector.extract_strided_slice %19 {offsets = [48, 0], sizes = [4, 128], strides = [1, 1]} : vector<64x128xf32> to vector<4x128xf32>
    %118 = tpu.concatenate %116, %117 in 0 : vector<4x128xf32>, vector<4x128xf32> -> vector<8x128xf32>
    %cst_27 = arith.constant dense<0.000000e+00> : vector<8x128xf32>
    %119 = tpu.matmul %115, %21, %cst_27 {dimension_numbers = #tpu.dot_dimension_numbers<[1], [0], [0], [1], [0, 0, 1, 1], [], []>} : vector<8x32xf32>, vector<32x128xf32>, vector<8x128xf32> -> vector<8x128xf32>
    %120 = arith.addf %118, %119 : vector<8x128xf32>
    %121 = arith.negf %120 : vector<8x128xf32>
    %122 = math.exp %121 : vector<8x128xf32>
    %cst_28 = arith.constant 1.000000e+00 : f32
    %123 = vector.broadcast %cst_28 : f32 to vector<8x128xf32>
    %124 = arith.addf %123, %122 : vector<8x128xf32>
    %125 = arith.divf %123, %124 : vector<8x128xf32>
    %126 = vector.extract_strided_slice %125 {offsets = [0, 0], sizes = [8, 32], strides = [1, 1]} : vector<8x128xf32> to vector<8x32xf32>
    %127 = vector.extract_strided_slice %125 {offsets = [0, 32], sizes = [8, 32], strides = [1, 1]} : vector<8x128xf32> to vector<8x32xf32>
    %128 = vector.extract_strided_slice %125 {offsets = [0, 64], sizes = [8, 32], strides = [1, 1]} : vector<8x128xf32> to vector<8x32xf32>
    %cst_29 = arith.constant 2.000000e+00 : f32
    %129 = vector.broadcast %cst_29 : f32 to vector<8x32xf32>
    %130 = arith.mulf %129, %128 : vector<8x32xf32>
    %cst_30 = arith.constant 1.000000e+00 : f32
    %131 = vector.broadcast %cst_30 : f32 to vector<8x32xf32>
    %132 = arith.subf %130, %131 : vector<8x32xf32>
    %133 = vector.extract_strided_slice %125 {offsets = [0, 96], sizes = [8, 32], strides = [1, 1]} : vector<8x128xf32> to vector<8x32xf32>
    %134 = arith.mulf %127, %113 : vector<8x32xf32>
    %135 = arith.mulf %126, %132 : vector<8x32xf32>
    %136 = arith.addf %134, %135 : vector<8x32xf32>
    %137 = math.tanh %136 : vector<8x32xf32>
    %138 = arith.mulf %133, %137 : vector<8x32xf32>
    %139 = vector.extract_strided_slice %19 {offsets = [20, 0], sizes = [4, 128], strides = [1, 1]} : vector<64x128xf32> to vector<4x128xf32>
    %140 = vector.extract_strided_slice %19 {offsets = [52, 0], sizes = [4, 128], strides = [1, 1]} : vector<64x128xf32> to vector<4x128xf32>
    %141 = tpu.concatenate %139, %140 in 0 : vector<4x128xf32>, vector<4x128xf32> -> vector<8x128xf32>
    %cst_31 = arith.constant dense<0.000000e+00> : vector<8x128xf32>
    %142 = tpu.matmul %138, %21, %cst_31 {dimension_numbers = #tpu.dot_dimension_numbers<[1], [0], [0], [1], [0, 0, 1, 1], [], []>} : vector<8x32xf32>, vector<32x128xf32>, vector<8x128xf32> -> vector<8x128xf32>
    %143 = arith.addf %141, %142 : vector<8x128xf32>
    %144 = arith.negf %143 : vector<8x128xf32>
    %145 = math.exp %144 : vector<8x128xf32>
    %cst_32 = arith.constant 1.000000e+00 : f32
    %146 = vector.broadcast %cst_32 : f32 to vector<8x128xf32>
    %147 = arith.addf %146, %145 : vector<8x128xf32>
    %148 = arith.divf %146, %147 : vector<8x128xf32>
    %149 = vector.extract_strided_slice %148 {offsets = [0, 0], sizes = [8, 32], strides = [1, 1]} : vector<8x128xf32> to vector<8x32xf32>
    %150 = vector.extract_strided_slice %148 {offsets = [0, 32], sizes = [8, 32], strides = [1, 1]} : vector<8x128xf32> to vector<8x32xf32>
    %151 = vector.extract_strided_slice %148 {offsets = [0, 64], sizes = [8, 32], strides = [1, 1]} : vector<8x128xf32> to vector<8x32xf32>
    %cst_33 = arith.constant 2.000000e+00 : f32
    %152 = vector.broadcast %cst_33 : f32 to vector<8x32xf32>
    %153 = arith.mulf %152, %151 : vector<8x32xf32>
    %cst_34 = arith.constant 1.000000e+00 : f32
    %154 = vector.broadcast %cst_34 : f32 to vector<8x32xf32>
    %155 = arith.subf %153, %154 : vector<8x32xf32>
    %156 = vector.extract_strided_slice %148 {offsets = [0, 96], sizes = [8, 32], strides = [1, 1]} : vector<8x128xf32> to vector<8x32xf32>
    %157 = arith.mulf %150, %136 : vector<8x32xf32>
    %158 = arith.mulf %149, %155 : vector<8x32xf32>
    %159 = arith.addf %157, %158 : vector<8x32xf32>
    %160 = math.tanh %159 : vector<8x32xf32>
    %161 = arith.mulf %156, %160 : vector<8x32xf32>
    %162 = vector.extract_strided_slice %19 {offsets = [24, 0], sizes = [4, 128], strides = [1, 1]} : vector<64x128xf32> to vector<4x128xf32>
    %163 = vector.extract_strided_slice %19 {offsets = [56, 0], sizes = [4, 128], strides = [1, 1]} : vector<64x128xf32> to vector<4x128xf32>
    %164 = tpu.concatenate %162, %163 in 0 : vector<4x128xf32>, vector<4x128xf32> -> vector<8x128xf32>
    %cst_35 = arith.constant dense<0.000000e+00> : vector<8x128xf32>
    %165 = tpu.matmul %161, %21, %cst_35 {dimension_numbers = #tpu.dot_dimension_numbers<[1], [0], [0], [1], [0, 0, 1, 1], [], []>} : vector<8x32xf32>, vector<32x128xf32>, vector<8x128xf32> -> vector<8x128xf32>
    %166 = arith.addf %164, %165 : vector<8x128xf32>
    %167 = arith.negf %166 : vector<8x128xf32>
    %168 = math.exp %167 : vector<8x128xf32>
    %cst_36 = arith.constant 1.000000e+00 : f32
    %169 = vector.broadcast %cst_36 : f32 to vector<8x128xf32>
    %170 = arith.addf %169, %168 : vector<8x128xf32>
    %171 = arith.divf %169, %170 : vector<8x128xf32>
    %172 = vector.extract_strided_slice %171 {offsets = [0, 0], sizes = [8, 32], strides = [1, 1]} : vector<8x128xf32> to vector<8x32xf32>
    %173 = vector.extract_strided_slice %171 {offsets = [0, 32], sizes = [8, 32], strides = [1, 1]} : vector<8x128xf32> to vector<8x32xf32>
    %174 = vector.extract_strided_slice %171 {offsets = [0, 64], sizes = [8, 32], strides = [1, 1]} : vector<8x128xf32> to vector<8x32xf32>
    %cst_37 = arith.constant 2.000000e+00 : f32
    %175 = vector.broadcast %cst_37 : f32 to vector<8x32xf32>
    %176 = arith.mulf %175, %174 : vector<8x32xf32>
    %cst_38 = arith.constant 1.000000e+00 : f32
    %177 = vector.broadcast %cst_38 : f32 to vector<8x32xf32>
    %178 = arith.subf %176, %177 : vector<8x32xf32>
    %179 = vector.extract_strided_slice %171 {offsets = [0, 96], sizes = [8, 32], strides = [1, 1]} : vector<8x128xf32> to vector<8x32xf32>
    %180 = arith.mulf %173, %159 : vector<8x32xf32>
    %181 = arith.mulf %172, %178 : vector<8x32xf32>
    %182 = arith.addf %180, %181 : vector<8x32xf32>
    %183 = math.tanh %182 : vector<8x32xf32>
    %184 = arith.mulf %179, %183 : vector<8x32xf32>
    %185 = vector.extract_strided_slice %19 {offsets = [28, 0], sizes = [4, 128], strides = [1, 1]} : vector<64x128xf32> to vector<4x128xf32>
    %186 = vector.extract_strided_slice %19 {offsets = [60, 0], sizes = [4, 128], strides = [1, 1]} : vector<64x128xf32> to vector<4x128xf32>
    %187 = tpu.concatenate %185, %186 in 0 : vector<4x128xf32>, vector<4x128xf32> -> vector<8x128xf32>
    %cst_39 = arith.constant dense<0.000000e+00> : vector<8x128xf32>
    %188 = tpu.matmul %184, %21, %cst_39 {dimension_numbers = #tpu.dot_dimension_numbers<[1], [0], [0], [1], [0, 0, 1, 1], [], []>} : vector<8x32xf32>, vector<32x128xf32>, vector<8x128xf32> -> vector<8x128xf32>
    %189 = arith.addf %187, %188 : vector<8x128xf32>
    %190 = arith.negf %189 : vector<8x128xf32>
    %191 = math.exp %190 : vector<8x128xf32>
    %cst_40 = arith.constant 1.000000e+00 : f32
    %192 = vector.broadcast %cst_40 : f32 to vector<8x128xf32>
    %193 = arith.addf %192, %191 : vector<8x128xf32>
    %194 = arith.divf %192, %193 : vector<8x128xf32>
    %195 = vector.extract_strided_slice %194 {offsets = [0, 0], sizes = [8, 32], strides = [1, 1]} : vector<8x128xf32> to vector<8x32xf32>
    %196 = vector.extract_strided_slice %194 {offsets = [0, 32], sizes = [8, 32], strides = [1, 1]} : vector<8x128xf32> to vector<8x32xf32>
    %197 = vector.extract_strided_slice %194 {offsets = [0, 64], sizes = [8, 32], strides = [1, 1]} : vector<8x128xf32> to vector<8x32xf32>
    %cst_41 = arith.constant 2.000000e+00 : f32
    %198 = vector.broadcast %cst_41 : f32 to vector<8x32xf32>
    %199 = arith.mulf %198, %197 : vector<8x32xf32>
    %cst_42 = arith.constant 1.000000e+00 : f32
    %200 = vector.broadcast %cst_42 : f32 to vector<8x32xf32>
    %201 = arith.subf %199, %200 : vector<8x32xf32>
    %202 = vector.extract_strided_slice %194 {offsets = [0, 96], sizes = [8, 32], strides = [1, 1]} : vector<8x128xf32> to vector<8x32xf32>
    %203 = arith.mulf %196, %182 : vector<8x32xf32>
    %204 = arith.mulf %195, %201 : vector<8x32xf32>
    %205 = arith.addf %203, %204 : vector<8x32xf32>
    %206 = math.tanh %205 : vector<8x32xf32>
    %207 = arith.mulf %202, %206 : vector<8x32xf32>
    %c48 = arith.constant 48 : index
    %c0_43 = arith.constant 0 : index
    %208 = vector.load %arg2[%c48, %c0_43] : memref<200x128xf32, #tpu.memory_space<vmem>>, vector<32x128xf32>
    %cst_44 = arith.constant dense<0.000000e+00> : vector<8x128xf32>
    %209 = tpu.matmul %207, %208, %cst_44 {dimension_numbers = #tpu.dot_dimension_numbers<[1], [0], [0], [1], [0, 0, 1, 1], [], []>} : vector<8x32xf32>, vector<32x128xf32>, vector<8x128xf32> -> vector<8x128xf32>
    %210 = vector.extract_strided_slice %209 {offsets = [0, 0], sizes = [4, 64], strides = [1, 1]} : vector<8x128xf32> to vector<4x64xf32>
    %211 = vector.extract_strided_slice %209 {offsets = [4, 64], sizes = [4, 64], strides = [1, 1]} : vector<8x128xf32> to vector<4x64xf32>
    %212 = arith.addf %210, %211 : vector<4x64xf32>
    %c80 = arith.constant 80 : index
    %c0_45 = arith.constant 0 : index
    %213 = vector.load %arg2[%c80, %c0_45] : memref<200x128xf32, #tpu.memory_space<vmem>>, vector<1x128xf32>
    %214 = vector.extract_strided_slice %213 {offsets = [0, 0], sizes = [1, 64], strides = [1, 1]} : vector<1x128xf32> to vector<1x64xf32>
    %215 = vector.broadcast %214 : vector<1x64xf32> to vector<4x64xf32>
    %216 = arith.addf %212, %215 : vector<4x64xf32>
    %cst_46 = arith.constant 0.000000e+00 : f32
    %217 = vector.broadcast %cst_46 : f32 to vector<4x64xf32>
    %218 = arith.maximumf %216, %217 : vector<4x64xf32>
    %c88 = arith.constant 88 : index
    %c0_47 = arith.constant 0 : index
    %219 = vector.load %arg2[%c88, %c0_47] : memref<200x128xf32, #tpu.memory_space<vmem>>, vector<64x128xf32>
    %220 = vector.extract_strided_slice %219 {offsets = [0, 0], sizes = [64, 32], strides = [1, 1]} : vector<64x128xf32> to vector<64x32xf32>
    %c152 = arith.constant 152 : index
    %c0_48 = arith.constant 0 : index
    %221 = vector.load %arg2[%c152, %c0_48] : memref<200x128xf32, #tpu.memory_space<vmem>>, vector<1x128xf32>
    %222 = vector.extract_strided_slice %221 {offsets = [0, 0], sizes = [1, 32], strides = [1, 1]} : vector<1x128xf32> to vector<1x32xf32>
    %cst_49 = arith.constant dense<0.000000e+00> : vector<4x32xf32>
    %223 = tpu.matmul %218, %220, %cst_49 {dimension_numbers = #tpu.dot_dimension_numbers<[1], [0], [0], [1], [0, 0, 1, 1], [], []>} : vector<4x64xf32>, vector<64x32xf32>, vector<4x32xf32> -> vector<4x32xf32>
    %224 = vector.broadcast %222 : vector<1x32xf32> to vector<4x32xf32>
    %225 = arith.addf %223, %224 : vector<4x32xf32>
    %cst_50 = arith.constant 0.000000e+00 : f32
    %226 = vector.broadcast %cst_50 : f32 to vector<4x32xf32>
    %227 = arith.maximumf %225, %226 : vector<4x32xf32>
    %c160 = arith.constant 160 : index
    %c0_51 = arith.constant 0 : index
    %228 = vector.load %arg2[%c160, %c0_51] : memref<200x128xf32, #tpu.memory_space<vmem>>, vector<32x128xf32>
    %c192 = arith.constant 192 : index
    %c0_52 = arith.constant 0 : index
    %229 = vector.load %arg2[%c192, %c0_52] : memref<200x128xf32, #tpu.memory_space<vmem>>, vector<1x128xf32>
    %cst_53 = arith.constant dense<0.000000e+00> : vector<4x128xf32>
    %230 = tpu.matmul %227, %228, %cst_53 {dimension_numbers = #tpu.dot_dimension_numbers<[1], [0], [0], [1], [0, 0, 1, 1], [], []>} : vector<4x32xf32>, vector<32x128xf32>, vector<4x128xf32> -> vector<4x128xf32>
    %231 = vector.broadcast %229 : vector<1x128xf32> to vector<4x128xf32>
    %232 = arith.addf %230, %231 : vector<4x128xf32>
    %cst_54 = arith.constant 0.000000e+00 : f32
    %233 = vector.broadcast %cst_54 : f32 to vector<4x128xf32>
    %234 = tpu.concatenate %232, %233 in 0 : vector<4x128xf32>, vector<4x128xf32> -> vector<8x128xf32>
    %c0_55 = arith.constant 0 : index
    %c0_56 = arith.constant 0 : index
    %235 = vector.load %arg3[%c0_55, %c0_56] : memref<8x128xf32, #tpu.memory_space<vmem>>, vector<8x128xf32>
    tpu.vector_store %arg3[%c0_55, %c0_56], %234 {strides = array<i32>} : memref<8x128xf32, #tpu.memory_space<vmem>>, vector<8x128xf32>,
    return
  }
}

</mosaic_0001>

<llo_original>
// kernel: tpu_custom_call.1
$region0: #{tpu_custom_call.1}
  #allocation0 [shape = 'u32[]', space=smem, size = 0x4, offset = 0x4, fixed_abs, tag = 'smem constant byte address 0x4 - core index']
  #allocation1 [shape = 'u32[144,128]{1,0:T(1,128)}', space=vmem, size = 0x12000, scoped, tag = 'internal scratch']
  %s0 = inlined_call_operand.vmem [shape: f32[32,8], index: 0, kind: input, shape index: {}]
  %s1 = inlined_call_operand.vmem [shape: f32[32,8], index: 1, kind: input, shape index: {}]
  %s2 = inlined_call_operand.hbm [shape: f32[200,128], index: 2, kind: input, shape index: {}]
  %s3 = inlined_call_operand.hbm [shape: f32[8,128], index: 3, kind: output, shape index: {}]
  %s4 = sld [smem:[#allocation0]]
  $region26: #{tpu_custom_call.1} parent=0
    _
  %s6 = ssub.s32 1, %s4
  %s7 = scalar_select 0, %s6, %s4
  $region1: #{tpu_custom_call.1} parent=0
    #allocation2 [shape = 'u8[102400]{0}', space=vmem, size = 0x19000, scoped, tag = 'input window, operand 2, single buffered']
    #allocation3 [shape = 's32[1]{0}', space=sflag, size = 0x4, scoped, tag = 'scoped memory for tpu_custom_call.1']
    #allocation4 [shape = 's32[1]{0}', space=sflag, size = 0x4, scoped, tag = 'scoped memory for tpu_custom_call.1']
    #allocation5 [shape = 'u8[4096]{0}', space=vmem, size = 0x1000, scoped, tag = 'output window, operand 0, single buffered']
    %8 = vsyncpa [#allocation3], 0
    %9 = vsyncpa [#allocation4], 0
    // Predicated region
    $region2: #{tpu_custom_call.1} parent=1 // pred_check
      _
    $region3: #{tpu_custom_call.1} parent=1 // pred_check_branch
      %11 = sbr.rel (0) target = $region5
    $region4: #{tpu_custom_call.1} parent=1 // pred_region
      _
    $region5: #{tpu_custom_call.1} parent=1 // pred_fallthru
      _
    // Predicated region
    $region6: #{tpu_custom_call.1} parent=1 // pred_check
      _
    $region7: #{tpu_custom_call.1} parent=1 // pred_check_branch
      %13 = sbr.rel (0) target = $region9
    $region8: #{tpu_custom_call.1} parent=1 // pred_region
      _
    $region9: #{tpu_custom_call.1} parent=1 // pred_fallthru
      _
    // Predicated region
    $region10: #{tpu_custom_call.1} parent=1 // pred_check
      _
    $region11: #{tpu_custom_call.1} parent=1 // pred_check_branch
      %15 = sbr.rel (0) target = $region13
    $region12: #{tpu_custom_call.1} parent=1 // pred_region
      %s17 = ssub.s32 3200, 3200
      %18 = vsyncadd [#allocation3], %s17
      %s19 = sshll.u32 [#allocation2], 4
      %s20 = int_to_ptr.vmem [resolvable:$true] %s19
      %25 = dma.hbm_to_vmem [thread:$0]  %s2, 3200, %s20, [#allocation3], 128, 128, 8
    $region13: #{tpu_custom_call.1} parent=1 // pred_fallthru
      _
    // Predicated region
    $region14: #{tpu_custom_call.1} parent=1 // pred_check
      _
    $region15: #{tpu_custom_call.1} parent=1 // pred_check_branch
      %27 = sbr.rel (0) target = $region17
    $region16: #{tpu_custom_call.1} parent=1 // pred_region
      %28 = dma.done [#allocation3], 3200
    $region17: #{tpu_custom_call.1} parent=1 // pred_fallthru
      _
    %v29 = vld [vmem:[#allocation2] sm:$0xff]
    %v30 = vld [vmem:[#allocation2 + $0x8] sm:$0xff]
    %v31 = vld [vmem:[#allocation2 + $0x10] sm:$0xff]
    %v32 = vld [vmem:[#allocation2 + $0x18] sm:$0xff]
    %v33 = vld [vmem:[#allocation2 + $0x20] sm:$0xff]
    %v34 = vld [vmem:[#allocation2 + $0x28] sm:$0x1]
    %v35 = vlaneseq
    %v36 = vand.u32 %v35, 127
    %vm37 = vcmp.ge.s32.totalorder %v36, 64
    %vm38 = vcmp.lt.s32.totalorder %v36, 96
    %vm39 = vmand %vm37, %vm38
    %v40 = vsel %vm39, 2.0, 1.0
    %v41 = vld [vmem:[%s0] sm:$0xff]
    %v42 = vld [vmem:[%s0 + $0x8] sm:$0xff]
    %v43 = vld [vmem:[%s0 + $0x10] sm:$0xff]
    %v44 = vld [vmem:[%s0 + $0x18] sm:$0xff]
    %v45 = vld [vmem:[%s1] sm:$0xff]
    %v46 = vld [vmem:[%s1 + $0x8] sm:$0xff]
    %v47 = vld [vmem:[%s1 + $0x10] sm:$0xff]
    %v48 = vld [vmem:[%s1 + $0x18] sm:$0xff]
    %v49 = vlaneseq
    %v50 = vshrl.u32 %v49, 7
    %v51 = vsub.s32 0, %v50
    %v52 = vrot.slane %v34, %v51
    %vm53 = vcmask 64512
    %v55 = vsel %vm53, %v41, 0
    %v58 = vsel %vm53, %v42, 0
    %v61 = vsel %vm53, %v43, 0
    %v64 = vsel %vm53, %v44, 0
    %v67 = vsel %vm53, %v45, 0
    %v70 = vsel %vm53, %v46, 0
    %v73 = vsel %vm53, %v47, 0
    %v76 = vsel %vm53, %v48, 0
    %78 = vmatprep.subr.mxu0 0.0
    %79 = vmatpush1.msra.mxu0 %v29
    %80 = vmatprep.subr.mxu0 0.0
    %81 = vmatpush1.msra.mxu0 0.0
    %82 = vmatprep.subr.mxu0 0.0
    %83 = vmatpush1.msra.mxu0 0.0
    %84 = vmatprep.subr.mxu0 0.0
    %85 = vmatpush1.msra.mxu0 0.0
    %86 = vmatprep.subr.mxu0 0.0
    %87 = vmatpush1.msra.mxu0 0.0
    %88 = vmatprep.subr.mxu0 0.0
    %89 = vmatpush1.msra.mxu0 0.0
    %90 = vmatprep.subr.mxu0 0.0
    %91 = vmatpush1.msra.mxu0 0.0
    %92 = vmatprep.subr.mxu0 0.0
    %93 = vmatpush1.msra.mxu0 0.0
    %94 = vmatprep.subr.mxu0 0.0
    %95 = vmatpush1.msra.mxu0 0.0
    %96 = vmatprep.subr.mxu0 0.0
    %97 = vmatpush1.msra.mxu0 0.0
    %98 = vmatprep.subr.mxu0 0.0
    %99 = vmatpush1.msra.mxu0 0.0
    %100 = vmatprep.subr.mxu0 0.0
    %101 = vmatpush1.msra.mxu0 0.0
    %102 = vmatprep.subr.mxu0 0.0
    %103 = vmatpush1.msra.mxu0 0.0
    %104 = vmatprep.subr.mxu0 0.0
    %105 = vmatpush1.msra.mxu0 0.0
    %106 = vmatprep.subr.mxu0 0.0
    %107 = vmatpush1.msra.mxu0 0.0
    %108 = vmatprep.subr.mxu0 0.0
    %109 = vmatpush1.msra.mxu0 0.0
    %110 = vmatprep.subr.mxu0 0.0
    %111 = vmatpush1.msra.mxu0 0.0
    %112 = vmatprep.subr.mxu0 0.0
    %113 = vmatpush1.msra.mxu0 0.0
    %114 = vmatprep.subr.mxu0 0.0
    %115 = vmatpush1.msra.mxu0 0.0
    %116 = vmatprep.subr.mxu0 0.0
    %117 = vmatpush1.msra.mxu0 0.0
    %118 = vmatprep.subr.mxu0 0.0
    %119 = vmatpush1.msra.mxu0 0.0
    %120 = vmatprep.subr.mxu0 0.0
    %121 = vmatpush1.msra.mxu0 0.0
    %122 = vmatprep.subr.mxu0 0.0
    %123 = vmatpush1.msra.mxu0 0.0
    %124 = vmatprep.subr.mxu0 0.0
    %125 = vmatpush1.msra.mxu0 0.0
    %126 = vmatprep.subr.mxu0 0.0
    %127 = vmatpush1.msra.mxu0 0.0
    %128 = vmatprep.subr.mxu0 0.0
    %129 = vmatpush1.msra.mxu0 0.0
    %130 = vmatprep.subr.mxu0 0.0
    %131 = vmatpush1.msra.mxu0 0.0
    %132 = vmatprep.subr.mxu0 0.0
    %133 = vmatpush1.msra.mxu0 0.0
    %134 = vmatprep.subr.mxu0 0.0
    %135 = vmatpush1.msra.mxu0 0.0
    %136 = vmatprep.subr.mxu0 0.0
    %137 = vmatpush1.msra.mxu0 0.0
    %138 = vmatprep.subr.mxu0 0.0
    %139 = vmatpush1.msra.mxu0 0.0
    %140 = vmatprep.subr.mxu0 0.0
    %141 = vmatpush1.msra.mxu0 0.0
    %142 = vmatprep.mubr.f32.mxu0 0.0
    %143 = vmatmul.mubr.f32.gmra.mrb[0].mxu0 %v55
    %v144 = vpop.f32.mrb[0].mxu0
    %v145 = vadd.f32 %v52, %v144
    %v146 = vpop.f32.mrb[0].mxu0
    %147 = vmatprep.mubr.f32.mxu0 0.0
    %148 = vmatmul.mubr.f32.gmra.mrb[0].mxu0 %v58
    %v149 = vpop.f32.mrb[0].mxu0
    %v150 = vadd.f32 %v52, %v149
    %v151 = vpop.f32.mrb[0].mxu0
    %152 = vmatprep.mubr.f32.mxu0 0.0
    %153 = vmatmul.mubr.f32.gmra.mrb[0].mxu0 %v61
    %v154 = vpop.f32.mrb[0].mxu0
    %v155 = vadd.f32 %v52, %v154
    %v156 = vpop.f32.mrb[0].mxu0
    %157 = vmatprep.mubr.f32.mxu0 0.0
    %158 = vmatmul.mubr.f32.gmra.mrb[0].mxu0 %v64
    %v159 = vpop.f32.mrb[0].mxu0
    %v160 = vadd.f32 %v52, %v159
    %v161 = vpop.f32.mrb[0].mxu0
    %162 = vmatprep.mubr.f32.mxu0 0.0
    %163 = vmatmul.mubr.f32.gmra.mrb[0].mxu0 %v67
    %v164 = vpop.f32.mrb[0].mxu0
    %v165 = vadd.f32 %v52, %v164
    %v166 = vpop.f32.mrb[0].mxu0
    %167 = vmatprep.mubr.f32.mxu0 0.0
    %168 = vmatmul.mubr.f32.gmra.mrb[0].mxu0 %v70
    %v169 = vpop.f32.mrb[0].mxu0
    %v170 = vadd.f32 %v52, %v169
    %v171 = vpop.f32.mrb[0].mxu0
    %172 = vmatprep.mubr.f32.mxu0 0.0
    %173 = vmatmul.mubr.f32.gmra.mrb[0].mxu0 %v73
    %v174 = vpop.f32.mrb[0].mxu0
    %v175 = vadd.f32 %v52, %v174
    %v176 = vpop.f32.mrb[0].mxu0
    %177 = vmatprep.mubr.f32.mxu0 0.0
    %178 = vmatmul.mubr.f32.gmra.mrb[0].mxu0 %v76
    %v179 = vpop.f32.mrb[0].mxu0
    %v180 = vadd.f32 %v52, %v179
    %v181 = vpop.f32.mrb[0].mxu0
    %182 = vdwg.mxu0
    %v183 = vmul.f32 %v145, %v40
    %v184 = vmul.f32 %v150, %v40
    %v185 = vmul.f32 %v155, %v40
    %v186 = vmul.f32 %v160, %v40
    %v187 = vmul.f32 %v165, %v40
    %v188 = vmul.f32 %v170, %v40
    %v189 = vmul.f32 %v175, %v40
    %v190 = vmul.f32 %v180, %v40
    %v191 = vmul.f32 %v30, %v40
    %v192 = vmul.f32 %v31, %v40
    %v193 = vmul.f32 %v32, %v40
    %v194 = vmul.f32 %v33, %v40
    %v196 = vrot.slane %v187, 4
    %vm198 = vcmask 1043456
    %v199 = vsel %vm198, %v183, %v196
    %vm200 = vcmask 261120
    %v202 = vsel %vm200, 0.0, 0
    %204 = vmatprep.subr.mxu0 0.0
    %205 = vmatpush1.msra.mxu0 %v191
    %206 = vmatprep.subr.mxu0 0.0
    %207 = vmatpush1.msra.mxu0 %v192
    %208 = vmatprep.subr.mxu0 0.0
    %209 = vmatpush1.msra.mxu0 %v193
    %210 = vmatprep.subr.mxu0 0.0
    %211 = vmatpush1.msra.mxu0 %v194
    %212 = vmatprep.subr.mxu0 0.0
    %213 = vmatpush1.msra.mxu0 0.0
    %214 = vmatprep.subr.mxu0 0.0
    %215 = vmatpush1.msra.mxu0 0.0
    %216 = vmatprep.subr.mxu0 0.0
    %217 = vmatpush1.msra.mxu0 0.0
    %218 = vmatprep.subr.mxu0 0.0
    %219 = vmatpush1.msra.mxu0 0.0
    %220 = vmatprep.subr.mxu0 0.0
    %221 = vmatpush1.msra.mxu0 0.0
    %222 = vmatprep.subr.mxu0 0.0
    %223 = vmatpush1.msra.mxu0 0.0
    %224 = vmatprep.subr.mxu0 0.0
    %225 = vmatpush1.msra.mxu0 0.0
    %226 = vmatprep.subr.mxu0 0.0
    %227 = vmatpush1.msra.mxu0 0.0
    %228 = vmatprep.subr.mxu0 0.0
    %229 = vmatpush1.msra.mxu0 0.0
    %230 = vmatprep.subr.mxu0 0.0
    %231 = vmatpush1.msra.mxu0 0.0
    %232 = vmatprep.subr.mxu0 0.0
    %233 = vmatpush1.msra.mxu0 0.0
    %234 = vmatprep.subr.mxu0 0.0
    %235 = vmatpush1.msra.mxu0 0.0
    %236 = vmatprep.subr.mxu0 0.0
    %237 = vmatpush1.msra.mxu0 0.0
    %238 = vmatprep.subr.mxu0 0.0
    %239 = vmatpush1.msra.mxu0 0.0
    %240 = vmatprep.subr.mxu0 0.0
    %241 = vmatpush1.msra.mxu0 0.0
    %242 = vmatprep.subr.mxu0 0.0
    %243 = vmatpush1.msra.mxu0 0.0
    %244 = vmatprep.subr.mxu0 0.0
    %245 = vmatpush1.msra.mxu0 0.0
    %246 = vmatprep.subr.mxu0 0.0
    %247 = vmatpush1.msra.mxu0 0.0
    %248 = vmatprep.subr.mxu0 0.0
    %249 = vmatpush1.msra.mxu0 0.0
    %250 = vmatprep.subr.mxu0 0.0
    %251 = vmatpush1.msra.mxu0 0.0
    %252 = vmatprep.subr.mxu0 0.0
    %253 = vmatpush1.msra.mxu0 0.0
    %254 = vmatprep.subr.mxu0 0.0
    %255 = vmatpush1.msra.mxu0 0.0
    %256 = vmatprep.subr.mxu0 0.0
    %257 = vmatpush1.msra.mxu0 0.0
    %258 = vmatprep.subr.mxu0 0.0
    %259 = vmatpush1.msra.mxu0 0.0
    %260 = vmatprep.subr.mxu0 0.0
    %261 = vmatpush1.msra.mxu0 0.0
    %262 = vmatprep.subr.mxu0 0.0
    %263 = vmatpush1.msra.mxu0 0.0
    %264 = vmatprep.subr.mxu0 0.0
    %265 = vmatpush1.msra.mxu0 0.0
    %266 = vmatprep.subr.mxu0 0.0
    %267 = vmatpush1.msra.mxu0 0.0
    %268 = vmatprep.mubr.f32.mxu0 0.0
    %269 = vmatmul.mubr.f32.gmra.mrb[0].mxu0 %v202
    %v270 = vpop.f32.mrb[0].mxu0
    %v271 = vadd.f32 0.0, %v270
    %v272 = vpop.f32.mrb[0].mxu0
    %273 = vdwg.mxu0
    %v274 = vadd.f32 %v199, %v271
    %v275 = vxor.u32 %v274, 2147483648
    %v276 = vmul.f32 %v275, 1.442695
    %v277 = vpow.pop %v276
    %v278 = vadd.f32 %v277, 1.0
    %v279 = vrcp.pop %v278
    %v280 = vmul.f32 1.0, %v279
    %v281 = vmul.f32 %v280, 2.0
    %v282 = vsub.f32 %v281, 1.0
    %v283 = vmul.f32 %v280, 0.0
    %285 = vrot.lane.b32.xlu0 %v282, 64
    %v286 = vpop.permute.xlu0 %285
    %v288 = vmul.f32 %v280, %v286
    %290 = vrot.lane.b32.xlu0 %v288, 32
    %v291 = vpop.permute.xlu0 %290
    %v293 = vadd.f32 %v283, %v291
    %v294 = vtanh.pop %v293
    %296 = vrot.lane.b32.xlu0 %v294, 64
    %v297 = vpop.permute.xlu0 %296
    %v299 = vmul.f32 %v280, %v297
    %v301 = vrot.slane %v183, 4
    %v303 = vsel %vm198, %v301, %v187
    %305 = vrot.lane.b32.xlu0 %v299, 32
    %v306 = vpop.permute.xlu0 %305
    %v307 = vsel %vm200, %v306, 0
    %309 = vmatprep.subr.mxu0 0.0
    %310 = vmatpush1.msra.mxu0 %v191
    %311 = vmatprep.subr.mxu0 0.0
    %312 = vmatpush1.msra.mxu0 %v192
    %313 = vmatprep.subr.mxu0 0.0
    %314 = vmatpush1.msra.mxu0 %v193
    %315 = vmatprep.subr.mxu0 0.0
    %316 = vmatpush1.msra.mxu0 %v194
    %317 = vmatprep.subr.mxu0 0.0
    %318 = vmatpush1.msra.mxu0 0.0
    %319 = vmatprep.subr.mxu0 0.0
    %320 = vmatpush1.msra.mxu0 0.0
    %321 = vmatprep.subr.mxu0 0.0
    %322 = vmatpush1.msra.mxu0 0.0
    %323 = vmatprep.subr.mxu0 0.0
    %324 = vmatpush1.msra.mxu0 0.0
    %325 = vmatprep.subr.mxu0 0.0
    %326 = vmatpush1.msra.mxu0 0.0
    %327 = vmatprep.subr.mxu0 0.0
    %328 = vmatpush1.msra.mxu0 0.0
    %329 = vmatprep.subr.mxu0 0.0
    %330 = vmatpush1.msra.mxu0 0.0
    %331 = vmatprep.subr.mxu0 0.0
    %332 = vmatpush1.msra.mxu0 0.0
    %333 = vmatprep.subr.mxu0 0.0
    %334 = vmatpush1.msra.mxu0 0.0
    %335 = vmatprep.subr.mxu0 0.0
    %336 = vmatpush1.msra.mxu0 0.0
    %337 = vmatprep.subr.mxu0 0.0
    %338 = vmatpush1.msra.mxu0 0.0
    %339 = vmatprep.subr.mxu0 0.0
    %340 = vmatpush1.msra.mxu0 0.0
    %341 = vmatprep.subr.mxu0 0.0
    %342 = vmatpush1.msra.mxu0 0.0
    %343 = vmatprep.subr.mxu0 0.0
    %344 = vmatpush1.msra.mxu0 0.0
    %345 = vmatprep.subr.mxu0 0.0
    %346 = vmatpush1.msra.mxu0 0.0
    %347 = vmatprep.subr.mxu0 0.0
    %348 = vmatpush1.msra.mxu0 0.0
    %349 = vmatprep.subr.mxu0 0.0
    %350 = vmatpush1.msra.mxu0 0.0
    %351 = vmatprep.subr.mxu0 0.0
    %352 = vmatpush1.msra.mxu0 0.0
    %353 = vmatprep.subr.mxu0 0.0
    %354 = vmatpush1.msra.mxu0 0.0
    %355 = vmatprep.subr.mxu0 0.0
    %356 = vmatpush1.msra.mxu0 0.0
    %357 = vmatprep.subr.mxu0 0.0
    %358 = vmatpush1.msra.mxu0 0.0
    %359 = vmatprep.subr.mxu0 0.0
    %360 = vmatpush1.msra.mxu0 0.0
    %361 = vmatprep.subr.mxu0 0.0
    %362 = vmatpush1.msra.mxu0 0.0
    %363 = vmatprep.subr.mxu0 0.0
    %364 = vmatpush1.msra.mxu0 0.0
    %365 = vmatprep.subr.mxu0 0.0
    %366 = vmatpush1.msra.mxu0 0.0
    %367 = vmatprep.subr.mxu0 0.0
    %368 = vmatpush1.msra.mxu0 0.0
    %369 = vmatprep.subr.mxu0 0.0
    %370 = vmatpush1.msra.mxu0 0.0
    %371 = vmatprep.subr.mxu0 0.0
    %372 = vmatpush1.msra.mxu0 0.0
    %373 = vmatprep.mubr.f32.mxu0 0.0
    %374 = vmatmul.mubr.f32.gmra.mrb[0].mxu0 %v307
    %v375 = vpop.f32.mrb[0].mxu0
    %v376 = vadd.f32 0.0, %v375
    %v377 = vpop.f32.mrb[0].mxu0
    %378 = vdwg.mxu0
    %v379 = vadd.f32 %v303, %v376
    %v380 = vxor.u32 %v379, 2147483648
    %v381 = vmul.f32 %v380, 1.442695
    %v382 = vpow.pop %v381
    %v383 = vadd.f32 %v382, 1.0
    %v384 = vrcp.pop %v383
    %v385 = vmul.f32 1.0, %v384
    %v386 = vmul.f32 %v385, 2.0
    %v387 = vsub.f32 %v386, 1.0
    %v388 = vmul.f32 %v385, %v293
    %390 = vrot.lane.b32.xlu0 %v387, 64
    %v391 = vpop.permute.xlu0 %390
    %v393 = vmul.f32 %v385, %v391
    %395 = vrot.lane.b32.xlu0 %v393, 32
    %v396 = vpop.permute.xlu0 %395
    %v398 = vadd.f32 %v388, %v396
    %v399 = vtanh.pop %v398
    %401 = vrot.lane.b32.xlu0 %v399, 64
    %v402 = vpop.permute.xlu0 %401
    %v404 = vmul.f32 %v385, %v402
    %v406 = vrot.slane %v188, 4
    %v408 = vsel %vm198, %v184, %v406
    %410 = vrot.lane.b32.xlu0 %v404, 32
    %v411 = vpop.permute.xlu0 %410
    %v412 = vsel %vm200, %v411, 0
    %414 = vmatprep.subr.mxu0 0.0
    %415 = vmatpush1.msra.mxu0 %v191
    %416 = vmatprep.subr.mxu0 0.0
    %417 = vmatpush1.msra.mxu0 %v192
    %418 = vmatprep.subr.mxu0 0.0
    %419 = vmatpush1.msra.mxu0 %v193
    %420 = vmatprep.subr.mxu0 0.0
    %421 = vmatpush1.msra.mxu0 %v194
    %422 = vmatprep.subr.mxu0 0.0
    %423 = vmatpush1.msra.mxu0 0.0
    %424 = vmatprep.subr.mxu0 0.0
    %425 = vmatpush1.msra.mxu0 0.0
    %426 = vmatprep.subr.mxu0 0.0
    %427 = vmatpush1.msra.mxu0 0.0
    %428 = vmatprep.subr.mxu0 0.0
    %429 = vmatpush1.msra.mxu0 0.0
    %430 = vmatprep.subr.mxu0 0.0
    %431 = vmatpush1.msra.mxu0 0.0
    %432 = vmatprep.subr.mxu0 0.0
    %433 = vmatpush1.msra.mxu0 0.0
    %434 = vmatprep.subr.mxu0 0.0
    %435 = vmatpush1.msra.mxu0 0.0
    %436 = vmatprep.subr.mxu0 0.0
    %437 = vmatpush1.msra.mxu0 0.0
    %438 = vmatprep.subr.mxu0 0.0
    %439 = vmatpush1.msra.mxu0 0.0
    %440 = vmatprep.subr.mxu0 0.0
    %441 = vmatpush1.msra.mxu0 0.0
    %442 = vmatprep.subr.mxu0 0.0
    %443 = vmatpush1.msra.mxu0 0.0
    %444 = vmatprep.subr.mxu0 0.0
    %445 = vmatpush1.msra.mxu0 0.0
    %446 = vmatprep.subr.mxu0 0.0
    %447 = vmatpush1.msra.mxu0 0.0
    %448 = vmatprep.subr.mxu0 0.0
    %449 = vmatpush1.msra.mxu0 0.0
    %450 = vmatprep.subr.mxu0 0.0
    %451 = vmatpush1.msra.mxu0 0.0
    %452 = vmatprep.subr.mxu0 0.0
    %453 = vmatpush1.msra.mxu0 0.0
    %454 = vmatprep.subr.mxu0 0.0
    %455 = vmatpush1.msra.mxu0 0.0
    %456 = vmatprep.subr.mxu0 0.0
    %457 = vmatpush1.msra.mxu0 0.0
    %458 = vmatprep.subr.mxu0 0.0
    %459 = vmatpush1.msra.mxu0 0.0
    %460 = vmatprep.subr.mxu0 0.0
    %461 = vmatpush1.msra.mxu0 0.0
    %462 = vmatprep.subr.mxu0 0.0
    %463 = vmatpush1.msra.mxu0 0.0
    %464 = vmatprep.subr.mxu0 0.0
    %465 = vmatpush1.msra.mxu0 0.0
    %466 = vmatprep.subr.mxu0 0.0
    %467 = vmatpush1.msra.mxu0 0.0
    %468 = vmatprep.subr.mxu0 0.0
    %469 = vmatpush1.msra.mxu0 0.0
    %470 = vmatprep.subr.mxu0 0.0
    %471 = vmatpush1.msra.mxu0 0.0
    %472 = vmatprep.subr.mxu0 0.0
    %473 = vmatpush1.msra.mxu0 0.0
    %474 = vmatprep.subr.mxu0 0.0
    %475 = vmatpush1.msra.mxu0 0.0
    %476 = vmatprep.subr.mxu0 0.0
    %477 = vmatpush1.msra.mxu0 0.0
    %478 = vmatprep.mubr.f32.mxu0 0.0
    %479 = vmatmul.mubr.f32.gmra.mrb[0].mxu0 %v412
    %v480 = vpop.f32.mrb[0].mxu0
    %v481 = vadd.f32 0.0, %v480
    %v482 = vpop.f32.mrb[0].mxu0
    %483 = vdwg.mxu0
    %v484 = vadd.f32 %v408, %v481
    %v485 = vxor.u32 %v484, 2147483648
    %v486 = vmul.f32 %v485, 1.442695
    %v487 = vpow.pop %v486
    %v488 = vadd.f32 %v487, 1.0
    %v489 = vrcp.pop %v488
    %v490 = vmul.f32 1.0, %v489
    %v491 = vmul.f32 %v490, 2.0
    %v492 = vsub.f32 %v491, 1.0
    %v493 = vmul.f32 %v490, %v398
    %495 = vrot.lane.b32.xlu0 %v492, 64
    %v496 = vpop.permute.xlu0 %495
    %v498 = vmul.f32 %v490, %v496
    %500 = vrot.lane.b32.xlu0 %v498, 32
    %v501 = vpop.permute.xlu0 %500
    %v503 = vadd.f32 %v493, %v501
    %v504 = vtanh.pop %v503
    %506 = vrot.lane.b32.xlu0 %v504, 64
    %v507 = vpop.permute.xlu0 %506
    %v509 = vmul.f32 %v490, %v507
    %v511 = vrot.slane %v184, 4
    %v513 = vsel %vm198, %v511, %v188
    %515 = vrot.lane.b32.xlu0 %v509, 32
    %v516 = vpop.permute.xlu0 %515
    %v517 = vsel %vm200, %v516, 0
    %519 = vmatprep.subr.mxu0 0.0
    %520 = vmatpush1.msra.mxu0 %v191
    %521 = vmatprep.subr.mxu0 0.0
    %522 = vmatpush1.msra.mxu0 %v192
    %523 = vmatprep.subr.mxu0 0.0
    %524 = vmatpush1.msra.mxu0 %v193
    %525 = vmatprep.subr.mxu0 0.0
    %526 = vmatpush1.msra.mxu0 %v194
    %527 = vmatprep.subr.mxu0 0.0
    %528 = vmatpush1.msra.mxu0 0.0
    %529 = vmatprep.subr.mxu0 0.0
    %530 = vmatpush1.msra.mxu0 0.0
    %531 = vmatprep.subr.mxu0 0.0
    %532 = vmatpush1.msra.mxu0 0.0
    %533 = vmatprep.subr.mxu0 0.0
    %534 = vmatpush1.msra.mxu0 0.0
    %535 = vmatprep.subr.mxu0 0.0
    %536 = vmatpush1.msra.mxu0 0.0
    %537 = vmatprep.subr.mxu0 0.0
    %538 = vmatpush1.msra.mxu0 0.0
    %539 = vmatprep.subr.mxu0 0.0
    %540 = vmatpush1.msra.mxu0 0.0
    %541 = vmatprep.subr.mxu0 0.0
    %542 = vmatpush1.msra.mxu0 0.0
    %543 = vmatprep.subr.mxu0 0.0
    %544 = vmatpush1.msra.mxu0 0.0
    %545 = vmatprep.subr.mxu0 0.0
    %546 = vmatpush1.msra.mxu0 0.0
    %547 = vmatprep.subr.mxu0 0.0
    %548 = vmatpush1.msra.mxu0 0.0
    %549 = vmatprep.subr.mxu0 0.0
    %550 = vmatpush1.msra.mxu0 0.0
    %551 = vmatprep.subr.mxu0 0.0
    %552 = vmatpush1.msra.mxu0 0.0
    %553 = vmatprep.subr.mxu0 0.0
    %554 = vmatpush1.msra.mxu0 0.0
    %555 = vmatprep.subr.mxu0 0.0
    %556 = vmatpush1.msra.mxu0 0.0
    %557 = vmatprep.subr.mxu0 0.0
    %558 = vmatpush1.msra.mxu0 0.0
    %559 = vmatprep.subr.mxu0 0.0
    %560 = vmatpush1.msra.mxu0 0.0
    %561 = vmatprep.subr.mxu0 0.0
    %562 = vmatpush1.msra.mxu0 0.0
    %563 = vmatprep.subr.mxu0 0.0
    %564 = vmatpush1.msra.mxu0 0.0
    %565 = vmatprep.subr.mxu0 0.0
    %566 = vmatpush1.msra.mxu0 0.0
    %567 = vmatprep.subr.mxu0 0.0
    %568 = vmatpush1.msra.mxu0 0.0
    %569 = vmatprep.subr.mxu0 0.0
    %570 = vmatpush1.msra.mxu0 0.0
    %571 = vmatprep.subr.mxu0 0.0
    %572 = vmatpush1.msra.mxu0 0.0
    %573 = vmatprep.subr.mxu0 0.0
    %574 = vmatpush1.msra.mxu0 0.0
    %575 = vmatprep.subr.mxu0 0.0
    %576 = vmatpush1.msra.mxu0 0.0
    %577 = vmatprep.subr.mxu0 0.0
    %578 = vmatpush1.msra.mxu0 0.0
    %579 = vmatprep.subr.mxu0 0.0
    %580 = vmatpush1.msra.mxu0 0.0
    %581 = vmatprep.subr.mxu0 0.0
    %582 = vmatpush1.msra.mxu0 0.0
    %583 = vmatprep.mubr.f32.mxu0 0.0
    %584 = vmatmul.mubr.f32.gmra.mrb[0].mxu0 %v517
    %v585 = vpop.f32.mrb[0].mxu0
    %v586 = vadd.f32 0.0, %v585
    %v587 = vpop.f32.mrb[0].mxu0
    %588 = vdwg.mxu0
    %v589 = vadd.f32 %v513, %v586
    %v590 = vxor.u32 %v589, 2147483648
    %v591 = vmul.f32 %v590, 1.442695
    %v592 = vpow.pop %v591
    %v593 = vadd.f32 %v592, 1.0
    %v594 = vrcp.pop %v593
    %v595 = vmul.f32 1.0, %v594
    %v596 = vmul.f32 %v595, 2.0
    %v597 = vsub.f32 %v596, 1.0
    %v598 = vmul.f32 %v595, %v503
    %600 = vrot.lane.b32.xlu0 %v597, 64
    %v601 = vpop.permute.xlu0 %600
    %v603 = vmul.f32 %v595, %v601
    %605 = vrot.lane.b32.xlu0 %v603, 32
    %v606 = vpop.permute.xlu0 %605
    %v608 = vadd.f32 %v598, %v606
    %v609 = vtanh.pop %v608
    %611 = vrot.lane.b32.xlu0 %v609, 64
    %v612 = vpop.permute.xlu0 %611
    %v614 = vmul.f32 %v595, %v612
    %v616 = vrot.slane %v189, 4
    %v618 = vsel %vm198, %v185, %v616
    %620 = vrot.lane.b32.xlu0 %v614, 32
    %v621 = vpop.permute.xlu0 %620
    %v622 = vsel %vm200, %v621, 0
    %624 = vmatprep.subr.mxu0 0.0
    %625 = vmatpush1.msra.mxu0 %v191
    %626 = vmatprep.subr.mxu0 0.0
    %627 = vmatpush1.msra.mxu0 %v192
    %628 = vmatprep.subr.mxu0 0.0
    %629 = vmatpush1.msra.mxu0 %v193
    %630 = vmatprep.subr.mxu0 0.0
    %631 = vmatpush1.msra.mxu0 %v194
    %632 = vmatprep.subr.mxu0 0.0
    %633 = vmatpush1.msra.mxu0 0.0
    %634 = vmatprep.subr.mxu0 0.0
    %635 = vmatpush1.msra.mxu0 0.0
    %636 = vmatprep.subr.mxu0 0.0
    %637 = vmatpush1.msra.mxu0 0.0
    %638 = vmatprep.subr.mxu0 0.0
    %639 = vmatpush1.msra.mxu0 0.0
    %640 = vmatprep.subr.mxu0 0.0
    %641 = vmatpush1.msra.mxu0 0.0
    %642 = vmatprep.subr.mxu0 0.0
    %643 = vmatpush1.msra.mxu0 0.0
    %644 = vmatprep.subr.mxu0 0.0
    %645 = vmatpush1.msra.mxu0 0.0
    %646 = vmatprep.subr.mxu0 0.0
    %647 = vmatpush1.msra.mxu0 0.0
    %648 = vmatprep.subr.mxu0 0.0
    %649 = vmatpush1.msra.mxu0 0.0
    %650 = vmatprep.subr.mxu0 0.0
    %651 = vmatpush1.msra.mxu0 0.0
    %652 = vmatprep.subr.mxu0 0.0
    %653 = vmatpush1.msra.mxu0 0.0
    %654 = vmatprep.subr.mxu0 0.0
    %655 = vmatpush1.msra.mxu0 0.0
    %656 = vmatprep.subr.mxu0 0.0
    %657 = vmatpush1.msra.mxu0 0.0
    %658 = vmatprep.subr.mxu0 0.0
    %659 = vmatpush1.msra.mxu0 0.0
    %660 = vmatprep.subr.mxu0 0.0
    %661 = vmatpush1.msra.mxu0 0.0
    %662 = vmatprep.subr.mxu0 0.0
    %663 = vmatpush1.msra.mxu0 0.0
    %664 = vmatprep.subr.mxu0 0.0
    %665 = vmatpush1.msra.mxu0 0.0
    %666 = vmatprep.subr.mxu0 0.0
    %667 = vmatpush1.msra.mxu0 0.0
    %668 = vmatprep.subr.mxu0 0.0
    %669 = vmatpush1.msra.mxu0 0.0
    %670 = vmatprep.subr.mxu0 0.0
    %671 = vmatpush1.msra.mxu0 0.0
    %672 = vmatprep.subr.mxu0 0.0
    %673 = vmatpush1.msra.mxu0 0.0
    %674 = vmatprep.subr.mxu0 0.0
    %675 = vmatpush1.msra.mxu0 0.0
    %676 = vmatprep.subr.mxu0 0.0
    %677 = vmatpush1.msra.mxu0 0.0
    %678 = vmatprep.subr.mxu0 0.0
    %679 = vmatpush1.msra.mxu0 0.0
    %680 = vmatprep.subr.mxu0 0.0
    %681 = vmatpush1.msra.mxu0 0.0
    %682 = vmatprep.subr.mxu0 0.0
    %683 = vmatpush1.msra.mxu0 0.0
    %684 = vmatprep.subr.mxu0 0.0
    %685 = vmatpush1.msra.mxu0 0.0
    %686 = vmatprep.subr.mxu0 0.0
    %687 = vmatpush1.msra.mxu0 0.0
    %688 = vmatprep.mubr.f32.mxu0 0.0
    %689 = vmatmul.mubr.f32.gmra.mrb[0].mxu0 %v622
    %v690 = vpop.f32.mrb[0].mxu0
    %v691 = vadd.f32 0.0, %v690
    %v692 = vpop.f32.mrb[0].mxu0
    %693 = vdwg.mxu0
    %v694 = vadd.f32 %v618, %v691
    %v695 = vxor.u32 %v694, 2147483648
    %v696 = vmul.f32 %v695, 1.442695
    %v697 = vpow.pop %v696
    %v698 = vadd.f32 %v697, 1.0
    %v699 = vrcp.pop %v698
    %v700 = vmul.f32 1.0, %v699
    %v701 = vmul.f32 %v700, 2.0
    %v702 = vsub.f32 %v701, 1.0
    %v703 = vmul.f32 %v700, %v608
    %705 = vrot.lane.b32.xlu0 %v702, 64
    %v706 = vpop.permute.xlu0 %705
    %v708 = vmul.f32 %v700, %v706
    %710 = vrot.lane.b32.xlu0 %v708, 32
    %v711 = vpop.permute.xlu0 %710
    %v713 = vadd.f32 %v703, %v711
    %v714 = vtanh.pop %v713
    %716 = vrot.lane.b32.xlu0 %v714, 64
    %v717 = vpop.permute.xlu0 %716
    %v719 = vmul.f32 %v700, %v717
    %v721 = vrot.slane %v185, 4
    %v723 = vsel %vm198, %v721, %v189
    %725 = vrot.lane.b32.xlu0 %v719, 32
    %v726 = vpop.permute.xlu0 %725
    %v727 = vsel %vm200, %v726, 0
    %729 = vmatprep.subr.mxu0 0.0
    %730 = vmatpush1.msra.mxu0 %v191
    %731 = vmatprep.subr.mxu0 0.0
    %732 = vmatpush1.msra.mxu0 %v192
    %733 = vmatprep.subr.mxu0 0.0
    %734 = vmatpush1.msra.mxu0 %v193
    %735 = vmatprep.subr.mxu0 0.0
    %736 = vmatpush1.msra.mxu0 %v194
    %737 = vmatprep.subr.mxu0 0.0
    %738 = vmatpush1.msra.mxu0 0.0
    %739 = vmatprep.subr.mxu0 0.0
    %740 = vmatpush1.msra.mxu0 0.0
    %741 = vmatprep.subr.mxu0 0.0
    %742 = vmatpush1.msra.mxu0 0.0
    %743 = vmatprep.subr.mxu0 0.0
    %744 = vmatpush1.msra.mxu0 0.0
    %745 = vmatprep.subr.mxu0 0.0
    %746 = vmatpush1.msra.mxu0 0.0
    %747 = vmatprep.subr.mxu0 0.0
    %748 = vmatpush1.msra.mxu0 0.0
    %749 = vmatprep.subr.mxu0 0.0
    %750 = vmatpush1.msra.mxu0 0.0
    %751 = vmatprep.subr.mxu0 0.0
    %752 = vmatpush1.msra.mxu0 0.0
    %753 = vmatprep.subr.mxu0 0.0
    %754 = vmatpush1.msra.mxu0 0.0
    %755 = vmatprep.subr.mxu0 0.0
    %756 = vmatpush1.msra.mxu0 0.0
    %757 = vmatprep.subr.mxu0 0.0
    %758 = vmatpush1.msra.mxu0 0.0
    %759 = vmatprep.subr.mxu0 0.0
    %760 = vmatpush1.msra.mxu0 0.0
    %761 = vmatprep.subr.mxu0 0.0
    %762 = vmatpush1.msra.mxu0 0.0
    %763 = vmatprep.subr.mxu0 0.0
    %764 = vmatpush1.msra.mxu0 0.0
    %765 = vmatprep.subr.mxu0 0.0
    %766 = vmatpush1.msra.mxu0 0.0
    %767 = vmatprep.subr.mxu0 0.0
    %768 = vmatpush1.msra.mxu0 0.0
    %769 = vmatprep.subr.mxu0 0.0
    %770 = vmatpush1.msra.mxu0 0.0
    %771 = vmatprep.subr.mxu0 0.0
    %772 = vmatpush1.msra.mxu0 0.0
    %773 = vmatprep.subr.mxu0 0.0
    %774 = vmatpush1.msra.mxu0 0.0
    %775 = vmatprep.subr.mxu0 0.0
    %776 = vmatpush1.msra.mxu0 0.0
    %777 = vmatprep.subr.mxu0 0.0
    %778 = vmatpush1.msra.mxu0 0.0
    %779 = vmatprep.subr.mxu0 0.0
    %780 = vmatpush1.msra.mxu0 0.0
    %781 = vmatprep.subr.mxu0 0.0
    %782 = vmatpush1.msra.mxu0 0.0
    %783 = vmatprep.subr.mxu0 0.0
    %784 = vmatpush1.msra.mxu0 0.0
    %785 = vmatprep.subr.mxu0 0.0
    %786 = vmatpush1.msra.mxu0 0.0
    %787 = vmatprep.subr.mxu0 0.0
    %788 = vmatpush1.msra.mxu0 0.0
    %789 = vmatprep.subr.mxu0 0.0
    %790 = vmatpush1.msra.mxu0 0.0
    %791 = vmatprep.subr.mxu0 0.0
    %792 = vmatpush1.msra.mxu0 0.0
    %793 = vmatprep.mubr.f32.mxu0 0.0
    %794 = vmatmul.mubr.f32.gmra.mrb[0].mxu0 %v727
    %v795 = vpop.f32.mrb[0].mxu0
    %v796 = vadd.f32 0.0, %v795
    %v797 = vpop.f32.mrb[0].mxu0
    %798 = vdwg.mxu0
    %v799 = vadd.f32 %v723, %v796
    %v800 = vxor.u32 %v799, 2147483648
    %v801 = vmul.f32 %v800, 1.442695
    %v802 = vpow.pop %v801
    %v803 = vadd.f32 %v802, 1.0
    %v804 = vrcp.pop %v803
    %v805 = vmul.f32 1.0, %v804
    %v806 = vmul.f32 %v805, 2.0
    %v807 = vsub.f32 %v806, 1.0
    %v808 = vmul.f32 %v805, %v713
    %810 = vrot.lane.b32.xlu0 %v807, 64
    %v811 = vpop.permute.xlu0 %810
    %v813 = vmul.f32 %v805, %v811
    %815 = vrot.lane.b32.xlu0 %v813, 32
    %v816 = vpop.permute.xlu0 %815
    %v818 = vadd.f32 %v808, %v816
    %v819 = vtanh.pop %v818
    %821 = vrot.lane.b32.xlu0 %v819, 64
    %v822 = vpop.permute.xlu0 %821
    %v824 = vmul.f32 %v805, %v822
    %v826 = vrot.slane %v190, 4
    %v828 = vsel %vm198, %v186, %v826
    %830 = vrot.lane.b32.xlu0 %v824, 32
    %v831 = vpop.permute.xlu0 %830
    %v832 = vsel %vm200, %v831, 0
    %834 = vmatprep.subr.mxu0 0.0
    %835 = vmatpush1.msra.mxu0 %v191
    %836 = vmatprep.subr.mxu0 0.0
    %837 = vmatpush1.msra.mxu0 %v192
    %838 = vmatprep.subr.mxu0 0.0
    %839 = vmatpush1.msra.mxu0 %v193
    %840 = vmatprep.subr.mxu0 0.0
    %841 = vmatpush1.msra.mxu0 %v194
    %842 = vmatprep.subr.mxu0 0.0
    %843 = vmatpush1.msra.mxu0 0.0
    %844 = vmatprep.subr.mxu0 0.0
    %845 = vmatpush1.msra.mxu0 0.0
    %846 = vmatprep.subr.mxu0 0.0
    %847 = vmatpush1.msra.mxu0 0.0
    %848 = vmatprep.subr.mxu0 0.0
    %849 = vmatpush1.msra.mxu0 0.0
    %850 = vmatprep.subr.mxu0 0.0
    %851 = vmatpush1.msra.mxu0 0.0
    %852 = vmatprep.subr.mxu0 0.0
    %853 = vmatpush1.msra.mxu0 0.0
    %854 = vmatprep.subr.mxu0 0.0
    %855 = vmatpush1.msra.mxu0 0.0
    %856 = vmatprep.subr.mxu0 0.0
    %857 = vmatpush1.msra.mxu0 0.0
    %858 = vmatprep.subr.mxu0 0.0
    %859 = vmatpush1.msra.mxu0 0.0
    %860 = vmatprep.subr.mxu0 0.0
    %861 = vmatpush1.msra.mxu0 0.0
    %862 = vmatprep.subr.mxu0 0.0
    %863 = vmatpush1.msra.mxu0 0.0
    %864 = vmatprep.subr.mxu0 0.0
    %865 = vmatpush1.msra.mxu0 0.0
    %866 = vmatprep.subr.mxu0 0.0
    %867 = vmatpush1.msra.mxu0 0.0
    %868 = vmatprep.subr.mxu0 0.0
    %869 = vmatpush1.msra.mxu0 0.0
    %870 = vmatprep.subr.mxu0 0.0
    %871 = vmatpush1.msra.mxu0 0.0
    %872 = vmatprep.subr.mxu0 0.0
    %873 = vmatpush1.msra.mxu0 0.0
    %874 = vmatprep.subr.mxu0 0.0
    %875 = vmatpush1.msra.mxu0 0.0
    %876 = vmatprep.subr.mxu0 0.0
    %877 = vmatpush1.msra.mxu0 0.0
    %878 = vmatprep.subr.mxu0 0.0
    %879 = vmatpush1.msra.mxu0 0.0
    %880 = vmatprep.subr.mxu0 0.0
    %881 = vmatpush1.msra.mxu0 0.0
    %882 = vmatprep.subr.mxu0 0.0
    %883 = vmatpush1.msra.mxu0 0.0
    %884 = vmatprep.subr.mxu0 0.0
    %885 = vmatpush1.msra.mxu0 0.0
    %886 = vmatprep.subr.mxu0 0.0
    %887 = vmatpush1.msra.mxu0 0.0
    %888 = vmatprep.subr.mxu0 0.0
    %889 = vmatpush1.msra.mxu0 0.0
    %890 = vmatprep.subr.mxu0 0.0
    %891 = vmatpush1.msra.mxu0 0.0
    %892 = vmatprep.subr.mxu0 0.0
    %893 = vmatpush1.msra.mxu0 0.0
    %894 = vmatprep.subr.mxu0 0.0
    %895 = vmatpush1.msra.mxu0 0.0
    %896 = vmatprep.subr.mxu0 0.0
    %897 = vmatpush1.msra.mxu0 0.0
    %898 = vmatprep.mubr.f32.mxu0 0.0
    %899 = vmatmul.mubr.f32.gmra.mrb[0].mxu0 %v832
    %v900 = vpop.f32.mrb[0].mxu0
    %v901 = vadd.f32 0.0, %v900
    %v902 = vpop.f32.mrb[0].mxu0
    %903 = vdwg.mxu0
    %v904 = vadd.f32 %v828, %v901
    %v905 = vxor.u32 %v904, 2147483648
    %v906 = vmul.f32 %v905, 1.442695
    %v907 = vpow.pop %v906
    %v908 = vadd.f32 %v907, 1.0
    %v909 = vrcp.pop %v908
    %v910 = vmul.f32 1.0, %v909
    %v911 = vmul.f32 %v910, 2.0
    %v912 = vsub.f32 %v911, 1.0
    %v913 = vmul.f32 %v910, %v818
    %915 = vrot.lane.b32.xlu0 %v912, 64
    %v916 = vpop.permute.xlu0 %915
    %v918 = vmul.f32 %v910, %v916
    %920 = vrot.lane.b32.xlu0 %v918, 32
    %v921 = vpop.permute.xlu0 %920
    %v923 = vadd.f32 %v913, %v921
    %v924 = vtanh.pop %v923
    %926 = vrot.lane.b32.xlu0 %v924, 64
    %v927 = vpop.permute.xlu0 %926
    %v929 = vmul.f32 %v910, %v927
    %v931 = vrot.slane %v186, 4
    %v933 = vsel %vm198, %v931, %v190
    %935 = vrot.lane.b32.xlu0 %v929, 32
    %v936 = vpop.permute.xlu0 %935
    %v937 = vsel %vm200, %v936, 0
    %939 = vmatprep.subr.mxu0 0.0
    %940 = vmatpush1.msra.mxu0 %v191
    %941 = vmatprep.subr.mxu0 0.0
    %942 = vmatpush1.msra.mxu0 %v192
    %943 = vmatprep.subr.mxu0 0.0
    %944 = vmatpush1.msra.mxu0 %v193
    %945 = vmatprep.subr.mxu0 0.0
    %946 = vmatpush1.msra.mxu0 %v194
    %947 = vmatprep.subr.mxu0 0.0
    %948 = vmatpush1.msra.mxu0 0.0
    %949 = vmatprep.subr.mxu0 0.0
    %950 = vmatpush1.msra.mxu0 0.0
    %951 = vmatprep.subr.mxu0 0.0
    %952 = vmatpush1.msra.mxu0 0.0
    %953 = vmatprep.subr.mxu0 0.0
    %954 = vmatpush1.msra.mxu0 0.0
    %955 = vmatprep.subr.mxu0 0.0
    %956 = vmatpush1.msra.mxu0 0.0
    %957 = vmatprep.subr.mxu0 0.0
    %958 = vmatpush1.msra.mxu0 0.0
    %959 = vmatprep.subr.mxu0 0.0
    %960 = vmatpush1.msra.mxu0 0.0
    %961 = vmatprep.subr.mxu0 0.0
    %962 = vmatpush1.msra.mxu0 0.0
    %963 = vmatprep.subr.mxu0 0.0
    %964 = vmatpush1.msra.mxu0 0.0
    %965 = vmatprep.subr.mxu0 0.0
    %966 = vmatpush1.msra.mxu0 0.0
    %967 = vmatprep.subr.mxu0 0.0
    %968 = vmatpush1.msra.mxu0 0.0
    %969 = vmatprep.subr.mxu0 0.0
    %970 = vmatpush1.msra.mxu0 0.0
    %971 = vmatprep.subr.mxu0 0.0
    %972 = vmatpush1.msra.mxu0 0.0
    %973 = vmatprep.subr.mxu0 0.0
    %974 = vmatpush1.msra.mxu0 0.0
    %975 = vmatprep.subr.mxu0 0.0
    %976 = vmatpush1.msra.mxu0 0.0
    %977 = vmatprep.subr.mxu0 0.0
    %978 = vmatpush1.msra.mxu0 0.0
    %979 = vmatprep.subr.mxu0 0.0
    %980 = vmatpush1.msra.mxu0 0.0
    %981 = vmatprep.subr.mxu0 0.0
    %982 = vmatpush1.msra.mxu0 0.0
    %983 = vmatprep.subr.mxu0 0.0
    %984 = vmatpush1.msra.mxu0 0.0
    %985 = vmatprep.subr.mxu0 0.0
    %986 = vmatpush1.msra.mxu0 0.0
    %987 = vmatprep.subr.mxu0 0.0
    %988 = vmatpush1.msra.mxu0 0.0
    %989 = vmatprep.subr.mxu0 0.0
    %990 = vmatpush1.msra.mxu0 0.0
    %991 = vmatprep.subr.mxu0 0.0
    %992 = vmatpush1.msra.mxu0 0.0
    %993 = vmatprep.subr.mxu0 0.0
    %994 = vmatpush1.msra.mxu0 0.0
    %995 = vmatprep.subr.mxu0 0.0
    %996 = vmatpush1.msra.mxu0 0.0
    %997 = vmatprep.subr.mxu0 0.0
    %998 = vmatpush1.msra.mxu0 0.0
    %999 = vmatprep.subr.mxu0 0.0
    %1000 = vmatpush1.msra.mxu0 0.0
    %1001 = vmatprep.subr.mxu0 0.0
    %1002 = vmatpush1.msra.mxu0 0.0
    %1003 = vmatprep.mubr.f32.mxu0 0.0
    %1004 = vmatmul.mubr.f32.gmra.mrb[0].mxu0 %v937
    %v1005 = vpop.f32.mrb[0].mxu0
    %v1006 = vadd.f32 0.0, %v1005
    %v1007 = vpop.f32.mrb[0].mxu0
    %1008 = vdwg.mxu0
    %v1009 = vadd.f32 %v933, %v1006
    %v1010 = vxor.u32 %v1009, 2147483648
    %v1011 = vmul.f32 %v1010, 1.442695
    %v1012 = vpow.pop %v1011
    %v1013 = vadd.f32 %v1012, 1.0
    %v1014 = vrcp.pop %v1013
    %v1015 = vmul.f32 1.0, %v1014
    %v1016 = vmul.f32 %v1015, 2.0
    %v1017 = vsub.f32 %v1016, 1.0
    %v1018 = vmul.f32 %v1015, %v923
    %1020 = vrot.lane.b32.xlu0 %v1017, 64
    %v1021 = vpop.permute.xlu0 %1020
    %v1023 = vmul.f32 %v1015, %v1021
    %1025 = vrot.lane.b32.xlu0 %v1023, 32
    %v1026 = vpop.permute.xlu0 %1025
    %v1028 = vadd.f32 %v1018, %v1026
    %v1029 = vtanh.pop %v1028
    %1031 = vrot.lane.b32.xlu0 %v1029, 64
    %v1032 = vpop.permute.xlu0 %1031
    %v1034 = vmul.f32 %v1015, %v1032
    %v1035 = vld [vmem:[#allocation2 + $0x30] sm:$0xff]
    %v1036 = vld [vmem:[#allocation2 + $0x38] sm:$0xff]
    %v1037 = vld [vmem:[#allocation2 + $0x40] sm:$0xff]
    %v1038 = vld [vmem:[#allocation2 + $0x48] sm:$0xff]
    %1040 = vrot.lane.b32.xlu0 %v1034, 32
    %v1041 = vpop.permute.xlu0 %1040
    %v1042 = vsel %vm200, %v1041, 0
    %1044 = vmatprep.subr.mxu0 0.0
    %1045 = vmatpush1.msra.mxu0 %v1035
    %1046 = vmatprep.subr.mxu0 0.0
    %1047 = vmatpush1.msra.mxu0 %v1036
    %1048 = vmatprep.subr.mxu0 0.0
    %1049 = vmatpush1.msra.mxu0 %v1037
    %1050 = vmatprep.subr.mxu0 0.0
    %1051 = vmatpush1.msra.mxu0 %v1038
    %1052 = vmatprep.subr.mxu0 0.0
    %1053 = vmatpush1.msra.mxu0 0.0
    %1054 = vmatprep.subr.mxu0 0.0
    %1055 = vmatpush1.msra.mxu0 0.0
    %1056 = vmatprep.subr.mxu0 0.0
    %1057 = vmatpush1.msra.mxu0 0.0
    %1058 = vmatprep.subr.mxu0 0.0
    %1059 = vmatpush1.msra.mxu0 0.0
    %1060 = vmatprep.subr.mxu0 0.0
    %1061 = vmatpush1.msra.mxu0 0.0
    %1062 = vmatprep.subr.mxu0 0.0
    %1063 = vmatpush1.msra.mxu0 0.0
    %1064 = vmatprep.subr.mxu0 0.0
    %1065 = vmatpush1.msra.mxu0 0.0
    %1066 = vmatprep.subr.mxu0 0.0
    %1067 = vmatpush1.msra.mxu0 0.0
    %1068 = vmatprep.subr.mxu0 0.0
    %1069 = vmatpush1.msra.mxu0 0.0
    %1070 = vmatprep.subr.mxu0 0.0
    %1071 = vmatpush1.msra.mxu0 0.0
    %1072 = vmatprep.subr.mxu0 0.0
    %1073 = vmatpush1.msra.mxu0 0.0
    %1074 = vmatprep.subr.mxu0 0.0
    %1075 = vmatpush1.msra.mxu0 0.0
    %1076 = vmatprep.subr.mxu0 0.0
    %1077 = vmatpush1.msra.mxu0 0.0
    %1078 = vmatprep.subr.mxu0 0.0
    %1079 = vmatpush1.msra.mxu0 0.0
    %1080 = vmatprep.subr.mxu0 0.0
    %1081 = vmatpush1.msra.mxu0 0.0
    %1082 = vmatprep.subr.mxu0 0.0
    %1083 = vmatpush1.msra.mxu0 0.0
    %1084 = vmatprep.subr.mxu0 0.0
    %1085 = vmatpush1.msra.mxu0 0.0
    %1086 = vmatprep.subr.mxu0 0.0
    %1087 = vmatpush1.msra.mxu0 0.0
    %1088 = vmatprep.subr.mxu0 0.0
    %1089 = vmatpush1.msra.mxu0 0.0
    %1090 = vmatprep.subr.mxu0 0.0
    %1091 = vmatpush1.msra.mxu0 0.0
    %1092 = vmatprep.subr.mxu0 0.0
    %1093 = vmatpush1.msra.mxu0 0.0
    %1094 = vmatprep.subr.mxu0 0.0
    %1095 = vmatpush1.msra.mxu0 0.0
    %1096 = vmatprep.subr.mxu0 0.0
    %1097 = vmatpush1.msra.mxu0 0.0
    %1098 = vmatprep.subr.mxu0 0.0
    %1099 = vmatpush1.msra.mxu0 0.0
    %1100 = vmatprep.subr.mxu0 0.0
    %1101 = vmatpush1.msra.mxu0 0.0
    %1102 = vmatprep.subr.mxu0 0.0
    %1103 = vmatpush1.msra.mxu0 0.0
    %1104 = vmatprep.subr.mxu0 0.0
    %1105 = vmatpush1.msra.mxu0 0.0
    %1106 = vmatprep.subr.mxu0 0.0
    %1107 = vmatpush1.msra.mxu0 0.0
    %1108 = vmatprep.mubr.f32.mxu0 0.0
    %1109 = vmatmul.mubr.f32.gmra.mrb[0].mxu0 %v1042
    %v1110 = vpop.f32.mrb[0].mxu0
    %v1111 = vadd.f32 0.0, %v1110
    %v1112 = vpop.f32.mrb[0].mxu0
    %1113 = vdwg.mxu0
    %v1115 = vrot.slane %v1111, 4
    %1116 = vrot.lane.b32.xlu0 %v1115, 64
    %v1117 = vpop.permute.xlu0 %1116
    %v1119 = vadd.f32 %v1111, %v1117
    %v1120 = vld [vmem:[#allocation2 + $0x50] sm:$0x1]
    %v1121 = vlaneseq
    %v1122 = vshrl.u32 %v1121, 7
    %v1123 = vsub.s32 0, %v1122
    %v1124 = vrot.slane %v1120, %v1123
    %v1125 = vadd.f32 %v1119, %v1124
    %v1126 = vmax.f32 %v1125, 0.0
    %v1127 = vld [vmem:[#allocation2 + $0x58] sm:$0xff]
    %v1128 = vld [vmem:[#allocation2 + $0x60] sm:$0xff]
    %v1129 = vld [vmem:[#allocation2 + $0x68] sm:$0xff]
    %v1130 = vld [vmem:[#allocation2 + $0x70] sm:$0xff]
    %v1131 = vld [vmem:[#allocation2 + $0x78] sm:$0xff]
    %v1132 = vld [vmem:[#allocation2 + $0x80] sm:$0xff]
    %v1133 = vld [vmem:[#allocation2 + $0x88] sm:$0xff]
    %v1134 = vld [vmem:[#allocation2 + $0x90] sm:$0xff]
    %v1135 = vld [vmem:[#allocation2 + $0x98] sm:$0x1]
    %v1136 = vlaneseq
    %v1137 = vshrl.u32 %v1136, 7
    %v1138 = vsub.s32 0, %v1137
    %v1139 = vrot.slane %v1135, %v1138
    %vm1140 = vcmask 523264
    %v1142 = vsel %vm1140, %v1126, 0
    %1144 = vmatprep.subr.mxu0 0.0
    %1145 = vmatpush1.msra.mxu0 %v1127
    %1146 = vmatprep.subr.mxu0 0.0
    %1147 = vmatpush1.msra.mxu0 %v1128
    %1148 = vmatprep.subr.mxu0 0.0
    %1149 = vmatpush1.msra.mxu0 %v1129
    %1150 = vmatprep.subr.mxu0 0.0
    %1151 = vmatpush1.msra.mxu0 %v1130
    %1152 = vmatprep.subr.mxu0 0.0
    %1153 = vmatpush1.msra.mxu0 %v1131
    %1154 = vmatprep.subr.mxu0 0.0
    %1155 = vmatpush1.msra.mxu0 %v1132
    %1156 = vmatprep.subr.mxu0 0.0
    %1157 = vmatpush1.msra.mxu0 %v1133
    %1158 = vmatprep.subr.mxu0 0.0
    %1159 = vmatpush1.msra.mxu0 %v1134
    %1160 = vmatprep.subr.mxu0 0.0
    %1161 = vmatpush1.msra.mxu0 0.0
    %1162 = vmatprep.subr.mxu0 0.0
    %1163 = vmatpush1.msra.mxu0 0.0
    %1164 = vmatprep.subr.mxu0 0.0
    %1165 = vmatpush1.msra.mxu0 0.0
    %1166 = vmatprep.subr.mxu0 0.0
    %1167 = vmatpush1.msra.mxu0 0.0
    %1168 = vmatprep.subr.mxu0 0.0
    %1169 = vmatpush1.msra.mxu0 0.0
    %1170 = vmatprep.subr.mxu0 0.0
    %1171 = vmatpush1.msra.mxu0 0.0
    %1172 = vmatprep.subr.mxu0 0.0
    %1173 = vmatpush1.msra.mxu0 0.0
    %1174 = vmatprep.subr.mxu0 0.0
    %1175 = vmatpush1.msra.mxu0 0.0
    %1176 = vmatprep.subr.mxu0 0.0
    %1177 = vmatpush1.msra.mxu0 0.0
    %1178 = vmatprep.subr.mxu0 0.0
    %1179 = vmatpush1.msra.mxu0 0.0
    %1180 = vmatprep.subr.mxu0 0.0
    %1181 = vmatpush1.msra.mxu0 0.0
    %1182 = vmatprep.subr.mxu0 0.0
    %1183 = vmatpush1.msra.mxu0 0.0
    %1184 = vmatprep.subr.mxu0 0.0
    %1185 = vmatpush1.msra.mxu0 0.0
    %1186 = vmatprep.subr.mxu0 0.0
    %1187 = vmatpush1.msra.mxu0 0.0
    %1188 = vmatprep.subr.mxu0 0.0
    %1189 = vmatpush1.msra.mxu0 0.0
    %1190 = vmatprep.subr.mxu0 0.0
    %1191 = vmatpush1.msra.mxu0 0.0
    %1192 = vmatprep.subr.mxu0 0.0
    %1193 = vmatpush1.msra.mxu0 0.0
    %1194 = vmatprep.subr.mxu0 0.0
    %1195 = vmatpush1.msra.mxu0 0.0
    %1196 = vmatprep.subr.mxu0 0.0
    %1197 = vmatpush1.msra.mxu0 0.0
    %1198 = vmatprep.subr.mxu0 0.0
    %1199 = vmatpush1.msra.mxu0 0.0
    %1200 = vmatprep.subr.mxu0 0.0
    %1201 = vmatpush1.msra.mxu0 0.0
    %1202 = vmatprep.subr.mxu0 0.0
    %1203 = vmatpush1.msra.mxu0 0.0
    %1204 = vmatprep.subr.mxu0 0.0
    %1205 = vmatpush1.msra.mxu0 0.0
    %1206 = vmatprep.subr.mxu0 0.0
    %1207 = vmatpush1.msra.mxu0 0.0
    %1208 = vmatprep.mubr.f32.mxu0 0.0
    %1209 = vmatmul.mubr.f32.gmra.mrb[0].mxu0 %v1142
    %v1210 = vpop.f32.mrb[0].mxu0
    %v1211 = vadd.f32 %v1139, %v1210
    %v1212 = vpop.f32.mrb[0].mxu0
    %1213 = vdwg.mxu0
    %v1214 = vmax.f32 %v1211, 0.0
    %v1215 = vld [vmem:[#allocation2 + $0xa0] sm:$0xff]
    %v1216 = vld [vmem:[#allocation2 + $0xa8] sm:$0xff]
    %v1217 = vld [vmem:[#allocation2 + $0xb0] sm:$0xff]
    %v1218 = vld [vmem:[#allocation2 + $0xb8] sm:$0xff]
    %v1219 = vld [vmem:[#allocation2 + $0xc0] sm:$0x1]
    %v1220 = vlaneseq
    %v1221 = vshrl.u32 %v1220, 7
    %v1222 = vsub.s32 0, %v1221
    %v1223 = vrot.slane %v1219, %v1222
    %v1225 = vsel %vm200, %v1214, 0
    %1227 = vmatprep.subr.mxu0 0.0
    %1228 = vmatpush1.msra.mxu0 %v1215
    %1229 = vmatprep.subr.mxu0 0.0
    %1230 = vmatpush1.msra.mxu0 %v1216
    %1231 = vmatprep.subr.mxu0 0.0
    %1232 = vmatpush1.msra.mxu0 %v1217
    %1233 = vmatprep.subr.mxu0 0.0
    %1234 = vmatpush1.msra.mxu0 %v1218
    %1235 = vmatprep.subr.mxu0 0.0
    %1236 = vmatpush1.msra.mxu0 0.0
    %1237 = vmatprep.subr.mxu0 0.0
    %1238 = vmatpush1.msra.mxu0 0.0
    %1239 = vmatprep.subr.mxu0 0.0
    %1240 = vmatpush1.msra.mxu0 0.0
    %1241 = vmatprep.subr.mxu0 0.0
    %1242 = vmatpush1.msra.mxu0 0.0
    %1243 = vmatprep.subr.mxu0 0.0
    %1244 = vmatpush1.msra.mxu0 0.0
    %1245 = vmatprep.subr.mxu0 0.0
    %1246 = vmatpush1.msra.mxu0 0.0
    %1247 = vmatprep.subr.mxu0 0.0
    %1248 = vmatpush1.msra.mxu0 0.0
    %1249 = vmatprep.subr.mxu0 0.0
    %1250 = vmatpush1.msra.mxu0 0.0
    %1251 = vmatprep.subr.mxu0 0.0
    %1252 = vmatpush1.msra.mxu0 0.0
    %1253 = vmatprep.subr.mxu0 0.0
    %1254 = vmatpush1.msra.mxu0 0.0
    %1255 = vmatprep.subr.mxu0 0.0
    %1256 = vmatpush1.msra.mxu0 0.0
    %1257 = vmatprep.subr.mxu0 0.0
    %1258 = vmatpush1.msra.mxu0 0.0
    %1259 = vmatprep.subr.mxu0 0.0
    %1260 = vmatpush1.msra.mxu0 0.0
    %1261 = vmatprep.subr.mxu0 0.0
    %1262 = vmatpush1.msra.mxu0 0.0
    %1263 = vmatprep.subr.mxu0 0.0
    %1264 = vmatpush1.msra.mxu0 0.0
    %1265 = vmatprep.subr.mxu0 0.0
    %1266 = vmatpush1.msra.mxu0 0.0
    %1267 = vmatprep.subr.mxu0 0.0
    %1268 = vmatpush1.msra.mxu0 0.0
    %1269 = vmatprep.subr.mxu0 0.0
    %1270 = vmatpush1.msra.mxu0 0.0
    %1271 = vmatprep.subr.mxu0 0.0
    %1272 = vmatpush1.msra.mxu0 0.0
    %1273 = vmatprep.subr.mxu0 0.0
    %1274 = vmatpush1.msra.mxu0 0.0
    %1275 = vmatprep.subr.mxu0 0.0
    %1276 = vmatpush1.msra.mxu0 0.0
    %1277 = vmatprep.subr.mxu0 0.0
    %1278 = vmatpush1.msra.mxu0 0.0
    %1279 = vmatprep.subr.mxu0 0.0
    %1280 = vmatpush1.msra.mxu0 0.0
    %1281 = vmatprep.subr.mxu0 0.0
    %1282 = vmatpush1.msra.mxu0 0.0
    %1283 = vmatprep.subr.mxu0 0.0
    %1284 = vmatpush1.msra.mxu0 0.0
    %1285 = vmatprep.subr.mxu0 0.0
    %1286 = vmatpush1.msra.mxu0 0.0
    %1287 = vmatprep.subr.mxu0 0.0
    %1288 = vmatpush1.msra.mxu0 0.0
    %1289 = vmatprep.subr.mxu0 0.0
    %1290 = vmatpush1.msra.mxu0 0.0
    %1291 = vmatprep.mubr.f32.mxu0 0.0
    %1292 = vmatmul.mubr.f32.gmra.mrb[0].mxu0 %v1225
    %v1293 = vpop.f32.mrb[0].mxu0
    %v1294 = vadd.f32 %v1223, %v1293
    %v1295 = vpop.f32.mrb[0].mxu0
    %1296 = vdwg.mxu0
    %v1297 = vsel %vm198, %v1294, 0.0
    %1298 = vst [vmem:[#allocation5] sm:$0xff] %v1297
    // Predicated region
    $region18: #{tpu_custom_call.1} parent=1 // pred_check
      _
    $region19: #{tpu_custom_call.1} parent=1 // pred_check_branch
      %1300 = sbr.rel (0) target = $region21
    $region20: #{tpu_custom_call.1} parent=1 // pred_region
      %s1302 = ssub.s32 128, 128
      %1303 = vsyncadd [#allocation4], %s1302
      %s1305 = sshll.u32 [#allocation5], 4
      %s1306 = int_to_ptr.vmem [resolvable:$true] %s1305
      %1308 = dma.vmem_to_hbm [thread:$0]  %s1306, 128, %s3, [#allocation4]
    $region21: #{tpu_custom_call.1} parent=1 // pred_fallthru
      _
    // Predicated region
    $region22: #{tpu_custom_call.1} parent=1 // pred_check
      _
    $region23: #{tpu_custom_call.1} parent=1 // pred_check_branch
      %1310 = sbr.rel (0) target = $region25
    $region24: #{tpu_custom_call.1} parent=1 // pred_region
      %1311 = dma.done [#allocation4], 128
    $region25: #{tpu_custom_call.1} parent=1 // pred_fallthru
      _
    %1312 = vsyncpa [#allocation3], 1
    %1313 = vsyncpa [#allocation4], 1

</llo_original>
